<compile_context>
chip_gen: v6e
topology: v6e:2x2x1
jax: 0.10.0
libtpu: 0.0.40
codegen_flags: <defaults>
</compile_context>

<pallas_src>
import jax
import jax.numpy as jnp
from jax.experimental import pallas as pl
from jax.experimental.pallas import tpu as pltpu


def _round_up(x, m):
    return (x + m - 1) // m * m


# --------------------------------------------------------------------------- #
# Kernel
# --------------------------------------------------------------------------- #
def ssinglematch_kernel(p_ref, q_ref, sl_ref,          # (Bt,Pt,H), (Bt,Qp,H), (Bt,1,1)
                        w1t_ref, b1_ref,               # (H,H), (1,H)
                        w2t_ref, b2_ref,               # (H,H), (1,H)
                        out_ref,                       # (Bt,Pt,H) or (Bt,1,Pt*H)
                        tq_ref):                       # VMEM scratch (Bt*Qp, H)
    Bt, Pt, H = p_ref.shape
    _, Qp, _ = q_ref.shape
    mm_dtype = p_ref.dtype
    approx_ok = mm_dtype != jnp.float32    # exact reciprocal on the strict f32 path

    # ---- Linear1 folded into one tall (Bt*Qp, H) @ (H, H) matmul, computed only
    # on the first P-tile of each batch block and cached in a persistent VMEM
    # scratch (the P-tile axis is "arbitrary" = sequential per core, so safe).
    @pl.when(pl.program_id(1) == 0)
    def _():
        q2 = q_ref[...].reshape(Bt * Qp, H)
        tq = jnp.dot(q2, w1t_ref[...], preferred_element_type=jnp.float32)
        tq_ref[...] = (tq + b1_ref[...]).astype(mm_dtype)

    p = p_ref[...]                                        # (Bt, Pt, H)
    trans_q = tq_ref[...].reshape(Bt, Qp, H)              # mm_dtype

    # ---- attention scores: att[b,i,j] = <p[b,i,:], trans_q[b,j,:]> (MXU, f32 acc)
    att = jnp.einsum('bph,bqh->bpq', p, trans_q,
                     preferred_element_type=jnp.float32)  # (Bt, Pt, Qp) f32

    # ---- masked softmax (mask-multiply variant; all element-wise math in f32).
    # Padded Q columns have col >= seq_len, so they are masked and the final
    # renormalisation removes their contribution exactly.
    col = jax.lax.broadcasted_iota(jnp.int32, (Bt, 1, Qp), 2)
    mask = (col < sl_ref[...]).astype(jnp.float32)        # (Bt, 1, Qp)
    v = att * mask
    v = v - jnp.max(v, axis=-1, keepdims=True)
    e = jnp.exp(v)
    # First normalisation: approx reciprocal (EUP slot); the renormalisation
    # below cancels its relative error (it only perturbs the 1e-13 epsilon).
    soft = e * pl.reciprocal(jnp.sum(e, axis=-1, keepdims=True), approx=True)
    soft = soft * mask
    # Second normalisation: approx on the bf16 path, exact on the f32 path.
    soft = soft * pl.reciprocal(jnp.sum(soft, axis=-1, keepdims=True) + 1e-13,
                                approx=approx_ok)

    # TODO(synk): F.dropout on att_norm skipped (identity / inference semantics).

    # ---- att_vec = att_norm @ proj_q (batched, natural MXU orientation)
    att_vec = jnp.einsum('bpq,bqh->bph', soft.astype(mm_dtype), q_ref[...],
                         preferred_element_type=jnp.float32)   # (Bt, Pt, H) f32

    # ---- Linear2 folded across the batch block + ReLU
    av2 = att_vec.reshape(Bt * Pt, H).astype(mm_dtype)
    out = jnp.dot(av2, w2t_ref[...], preferred_element_type=jnp.float32)
    out = jnp.maximum(out + b2_ref[...], 0.0)

    # out_ref is either (Bt, Pt, H) (H already a lane multiple) or the
    # lane-dense flattened slab (Bt, 1, Pt*H) used when H % 128 != 0.
    out_ref[...] = out.reshape(out_ref.shape).astype(out_ref.dtype)


# --------------------------------------------------------------------------- #
# VMEM sizing / block picking
# --------------------------------------------------------------------------- #
def _vmem_budget_and_limit():
    """Generation-aware VMEM sizing: ~48 MiB scoped limit on v7x (64 MiB
    physical), ~96 MiB on v5e/v6e (128 MiB physical); the tiler targets 85%
    of that limit to leave headroom for compiler scratch."""
    try:
        phys = int(getattr(pltpu.get_tpu_info(), "vmem_capacity_bytes", 0))
    except Exception:
        phys = 0
    if phys <= 0:
        phys = 128 << 20
    limit = min(phys * 3 // 4, 96 << 20)
    budget = int(limit * 0.85)
    return budget, limit


def _working_set_bytes(bt, pt, Qp, H, mm_esize, out_esize):
    """Per-step VMEM working set: double-buffered pipelined I/O blocks,
    single-buffered resident weights, the persistent trans_q scratch, and the
    f32 body intermediates (dominated by the (bt, pt, Qp) score tensor)."""
    f32 = 4
    dbuf = 2 * bt * ((pt + Qp) * H * mm_esize + pt * H * out_esize)
    dbuf += 2 * 8 * 128 * 4                         # padded (Bt,1,1) seq_len tile
    weights = 2 * H * H * mm_esize + 2 * H * f32    # single-buffered
    scratch = bt * Qp * H * mm_esize                # trans_q cache
    inter = bt * (Qp * H + 3 * pt * Qp + 2 * pt * H) * f32
    return dbuf + weights + scratch + inter


def _pick_blocks(B, Pp, Qp, H, mm_dtype, out_dtype, sub, budget, lane_dense_out):
    mm_esize = jnp.dtype(mm_dtype).itemsize
    out_esize = jnp.dtype(out_dtype).itemsize
    ws = lambda bt, pt: _working_set_bytes(bt, pt, Qp, H, mm_esize, out_esize)

    # P-tile candidates: multiples of the sublane pack dividing Pp; when the
    # output is a lane-dense slab, its last dim (pt*H) must stay 128-aligned.
    pts = [d for d in range(Pp, 0, -sub) if Pp % d == 0]
    if lane_dense_out:
        pts = [d for d in pts if (d * H) % 128 == 0] or [Pp]

    def largest_bt(pt):
        # >= 2 steps on the *parallel* batch axis feeds both v7x TensorCores;
        # then shrink until the working set fits the VMEM budget.
        bt = max(1, B // 2) if B >= 2 else 1
        while B % bt:
            bt -= 1
        while bt > 1 and ws(bt, pt) > budget:
            bt -= 1
            while B % bt:
                bt -= 1
        return bt

    for pt in pts:                      # prefer the largest P tile that fits
        bt = largest_bt(pt)
        if ws(bt, pt) <= budget:
            return bt, pt
    return 1, pts[-1]                   # best effort; Mosaic may still spill


# --------------------------------------------------------------------------- #
# Wrapper
# --------------------------------------------------------------------------- #
def ssinglematch_forward(proj_p, proj_q, seq_len, w1, b1, w2, b2,
                         block_b=None, block_p=None, use_bf16=True,
                         out_dtype=jnp.float32):
    """proj_p: (B,P,H), proj_q: (B,Q,H), seq_len: (B,) int.
    w1, w2: (H,H) in nn.Linear (out,in) convention; b1, b2: (H,)."""
    B, P, H = proj_p.shape
    _, Q, _ = proj_q.shape
    mm_dtype = jnp.bfloat16 if use_bf16 else jnp.float32
    sub = 16 if mm_dtype == jnp.bfloat16 else 8        # sublane packing

    # Pad P/Q up to the sublane pack so in-kernel (Bt,Q,H)<->(Bt*Q,H) reshapes
    # are tile-aligned. Padded Q columns are masked by seq_len; padded P rows
    # are sliced off below.
    Pp, Qp = _round_up(P, sub), _round_up(Q, sub)
    p = proj_p.astype(mm_dtype)
    q = proj_q.astype(mm_dtype)
    if Pp != P:
        p = jnp.pad(p, ((0, 0), (0, Pp - P), (0, 0)))
    if Qp != Q:
        q = jnp.pad(q, ((0, 0), (0, Qp - Q), (0, 0)))

    w1t = w1.T.astype(mm_dtype)
    w2t = w2.T.astype(mm_dtype)
    b1r = b1.reshape(1, H).astype(jnp.float32)
    b2r = b2.reshape(1, H).astype(jnp.float32)
    # seq_len rides along as a tiny (Bt,1,1) VMEM block so the mask build stays
    # fully vectorised (an SMEM scalar-prefetch copy would need per-row scalar
    # broadcasts in the kernel).
    sl = seq_len.astype(jnp.int32).reshape(B, 1, 1)

    budget, vmem_limit = _vmem_budget_and_limit()
    lane_dense_pref = (H % 128) != 0     # skip when H is already lane-dense

    Bt, Pt = _pick_blocks(B, Pp, Qp, H, mm_dtype, out_dtype, sub, budget,
                          lane_dense_pref)
    if block_b is not None:
        Bt = block_b
    if block_p is not None:
        Pt = block_p
    assert B % Bt == 0 and Pp % Pt == 0, (B, Bt, Pp, Pt)

    def run(single_buffer_weights, lane_dense_out):
        if lane_dense_out:
            out_shape = jax.ShapeDtypeStruct((B, 1, Pp * H), out_dtype)
            out_spec = pl.BlockSpec((Bt, 1, Pt * H), lambda i, j: (i, 0, j))
        else:
            out_shape = jax.ShapeDtypeStruct((B, Pp, H), out_dtype)
            out_spec = pl.BlockSpec((Bt, Pt, H), lambda i, j: (i, j, 0))

        # Constant index maps -> weights fetched once; single-buffering halves
        # their resident VMEM footprint (important for large H on v7x).
        wkw = dict(pipeline_mode=pl.Buffered(1)) if single_buffer_weights else {}
        grid_spec = pltpu.PrefetchScalarGridSpec(
            num_scalar_prefetch=0,
            grid=(B // Bt, Pp // Pt),
            in_specs=[
                pl.BlockSpec((Bt, Pt, H), lambda i, j: (i, j, 0)),   # proj_p
                pl.BlockSpec((Bt, Qp, H), lambda i, j: (i, 0, 0)),   # proj_q
                pl.BlockSpec((Bt, 1, 1), lambda i, j: (i, 0, 0)),    # seq_len
                pl.BlockSpec((H, H), lambda i, j: (0, 0), **wkw),    # W1^T
                pl.BlockSpec((1, H), lambda i, j: (0, 0), **wkw),    # b1
                pl.BlockSpec((H, H), lambda i, j: (0, 0), **wkw),    # W2^T
                pl.BlockSpec((1, H), lambda i, j: (0, 0), **wkw),    # b2
            ],
            out_specs=out_spec,
            scratch_shapes=[pltpu.VMEM((Bt * Qp, H), mm_dtype)],     # trans_q
        )
        out = pl.pallas_call(
            ssinglematch_kernel,
            out_shape=out_shape,
            grid_spec=grid_spec,
            compiler_params=pltpu.CompilerParams(
                # Batch axis parallel (>=2 steps -> both v7x cores busy);
                # P-tile axis sequential so the trans_q scratch reuse is safe.
                dimension_semantics=("parallel", "arbitrary"),
                vmem_limit_bytes=vmem_limit),
        )(p, q, sl, w1t, b1r, w2t, b2r)
        return out.reshape(B, Pp, H)[:, :P, :]

    # Most-optimized configuration first; degrade gracefully if this
    # JAX/Mosaic build rejects pl.Buffered(1) or the lane-dense store reshape.
    configs = [(True, lane_dense_pref), (False, lane_dense_pref)]
    if lane_dense_pref:
        configs += [(True, False), (False, False)]
    err = None
    for sb, ld in configs:
        try:
            return run(sb, ld)
        except Exception as e:     # lowering / compile-time rejection
            err = e
    raise err


# --------------------------------------------------------------------------- #
# Pure-JAX reference (dropout = identity)
# --------------------------------------------------------------------------- #
def _reference(proj_p, proj_q, seq_len, w1, b1, w2, b2, mm_dtype=jnp.float32):
    """Mirrors the PyTorch forward; mm_dtype mirrors the kernel's matmul-operand
    dtype (f32 accumulation)."""
    c = lambda x: x.astype(mm_dtype)
    f32 = jnp.float32
    trans_q = jnp.dot(c(proj_q), c(w1.T), preferred_element_type=f32) + b1
    att = jnp.einsum('bph,bqh->bpq', c(proj_p), c(trans_q),
                     preferred_element_type=f32)
    col = jnp.arange(att.shape[-1])[None, None, :]
    mask = (col < seq_len[:, None, None]).astype(f32)
    soft = jax.nn.softmax(att * mask, axis=-1) * mask
    soft = soft / (soft.sum(-1, keepdims=True) + 1e-13)
    att_vec = jnp.einsum('bpq,bqh->bph', c(soft), c(proj_q),
                         preferred_element_type=f32)
    out = jnp.dot(c(att_vec), c(w2.T), preferred_element_type=f32) + b2
    return jax.nn.relu(out)


if __name__ == "__main__":
    B, P, Q, H = 2, 8, 8, 32

    key = jax.random.PRNGKey(0)
    kp, kq, kw1, kb1, kw2, kb2 = jax.random.split(key, 6)

    proj_p = jax.random.normal(kp, (B, P, H), dtype=jnp.float32)
    proj_q = jax.random.normal(kq, (B, Q, H), dtype=jnp.float32)
    seq_len = jnp.array([5, 8], dtype=jnp.int32)

    # Deterministic "Linear" parameters (nn.Linear weight is (out, in)).
    bound = 1.0 / (H ** 0.5)
    w1 = jax.random.uniform(kw1, (H, H), minval=-bound, maxval=bound, dtype=jnp.float32)
    b1 = jax.random.uniform(kb1, (H,), minval=-bound, maxval=bound, dtype=jnp.float32)
    w2 = jax.random.uniform(kw2, (H, H), minval=-bound, maxval=bound, dtype=jnp.float32)
    b2 = jax.random.uniform(kb2, (H,), minval=-bound, maxval=bound, dtype=jnp.float32)

    # f32 path: strict check against the f32 reference.
    out_f32 = jax.block_until_ready(
        ssinglematch_forward(proj_p, proj_q, seq_len, w1, b1, w2, b2, use_bf16=False))
    ref_f32 = _reference(proj_p, proj_q, seq_len, w1, b1, w2, b2, jnp.float32)
    assert out_f32.shape == (B, P, H)
    assert jnp.max(jnp.abs(out_f32 - ref_f32)) < 1e-4

    # bf16 matmul path (default on every generation, incl. v5e): checked against
    # a reference with identically-cast operands + a loose f32 sanity check.
    out_bf16 = jax.block_until_ready(
        ssinglematch_forward(proj_p, proj_q, seq_len, w1, b1, w2, b2, use_bf16=True))
    ref_bf16 = _reference(proj_p, proj_q, seq_len, w1, b1, w2, b2, jnp.bfloat16)
    assert out_bf16.shape == (B, P, H)
    assert jnp.max(jnp.abs(out_bf16 - ref_bf16)) < 2e-2
    assert jnp.max(jnp.abs(out_bf16 - ref_f32)) < 0.35

    print("KERNEL_OK")
</pallas_src>

<mosaic_0001>
module attributes {stable_mosaic.version = 11 : i64} {
  func.func @ssinglematch_kernel(%arg0: i32, %arg1: i32, %arg2: memref<1x8x32xf32, #tpu.memory_space<vmem>>, %arg3: memref<1x8x32xf32, #tpu.memory_space<vmem>>, %arg4: memref<1x1x1xi32, #tpu.memory_space<vmem>>, %arg5: memref<32x32xf32, #tpu.memory_space<vmem>>, %arg6: memref<1x32xf32, #tpu.memory_space<vmem>>, %arg7: memref<32x32xf32, #tpu.memory_space<vmem>>, %arg8: memref<1x32xf32, #tpu.memory_space<vmem>>, %arg9: memref<1x1x256xf32, #tpu.memory_space<vmem>>, %arg10: memref<8x32xf32, #tpu.memory_space<vmem>>) attributes {dimension_semantics = [#tpu.dimension_semantics<parallel>, #tpu.dimension_semantics<arbitrary>], iteration_bounds = array<i64: 2, 1>, scalar_prefetch = 0 : i64, scratch_operands = 1 : i64, tpu.core_type = #tpu.core_type<tc>, window_params = [{transform_indices = @transform_0, window_bounds = array<i64: 1, 8, 32>}, {transform_indices = @transform_1, window_bounds = array<i64: 1, 8, 32>}, {transform_indices = @transform_2, window_bounds = array<i64: 1, 1, 1>}, {pipeline_mode = #tpu.pipeline_mode<synchronous>, transform_indices = @transform_3, window_bounds = array<i64: 32, 32>}, {pipeline_mode = #tpu.pipeline_mode<synchronous>, transform_indices = @transform_4, window_bounds = array<i64: 1, 32>}, {pipeline_mode = #tpu.pipeline_mode<synchronous>, transform_indices = @transform_5, window_bounds = array<i64: 32, 32>}, {pipeline_mode = #tpu.pipeline_mode<synchronous>, transform_indices = @transform_6, window_bounds = array<i64: 1, 32>}, {transform_indices = @transform_7, window_bounds = array<i64: 1, 1, 256>}]} {
    %c0_i32 = arith.constant 0 : i32
    %0 = arith.cmpi eq, %arg1, %c0_i32 : i32
    %1 = arith.extui %0 : i1 to i32
    %c0_i32_0 = arith.constant 0 : i32
    %2 = arith.cmpi ne, %1, %c0_i32_0 : i32
    scf.if %2 {
      %c0_25 = arith.constant 0 : index
      %c0_26 = arith.constant 0 : index
      %c0_27 = arith.constant 0 : index
      %46 = vector.load %arg3[%c0_25, %c0_26, %c0_27] : memref<1x8x32xf32, #tpu.memory_space<vmem>>, vector<1x8x32xf32>
      %47 = vector.shape_cast %46 : vector<1x8x32xf32> to vector<8x32xf32>
      %c0_28 = arith.constant 0 : index
      %c0_29 = arith.constant 0 : index
      %48 = vector.load %arg5[%c0_28, %c0_29] : memref<32x32xf32, #tpu.memory_space<vmem>>, vector<32x32xf32>
      %cst_30 = arith.constant dense<0.000000e+00> : vector<8x32xf32>
      %49 = tpu.matmul %47, %48, %cst_30 {dimension_numbers = #tpu.dot_dimension_numbers<[1], [0], [0], [1], [0, 0, 1, 1], [], []>} : vector<8x32xf32>, vector<32x32xf32>, vector<8x32xf32> -> vector<8x32xf32>
      %c0_31 = arith.constant 0 : index
      %c0_32 = arith.constant 0 : index
      %50 = vector.load %arg6[%c0_31, %c0_32] : memref<1x32xf32, #tpu.memory_space<vmem>>, vector<1x32xf32>
      %51 = vector.broadcast %50 : vector<1x32xf32> to vector<8x32xf32>
      %52 = arith.addf %49, %51 : vector<8x32xf32>
      %c0_33 = arith.constant 0 : index
      %c0_34 = arith.constant 0 : index
      %53 = vector.load %arg10[%c0_33, %c0_34] : memref<8x32xf32, #tpu.memory_space<vmem>>, vector<8x32xf32>
      tpu.vector_store %arg10[%c0_33, %c0_34], %52 {strides = array<i32>} : memref<8x32xf32, #tpu.memory_space<vmem>>, vector<8x32xf32>,
    } else {
    }
    %c0 = arith.constant 0 : index
    %c0_1 = arith.constant 0 : index
    %c0_2 = arith.constant 0 : index
    %3 = vector.load %arg2[%c0, %c0_1, %c0_2] : memref<1x8x32xf32, #tpu.memory_space<vmem>>, vector<1x8x32xf32>
    %c0_3 = arith.constant 0 : index
    %c0_4 = arith.constant 0 : index
    %4 = vector.load %arg10[%c0_3, %c0_4] : memref<8x32xf32, #tpu.memory_space<vmem>>, vector<8x32xf32>
    %5 = vector.shape_cast %4 : vector<8x32xf32> to vector<1x8x32xf32>
    "tpu.trace_start"() <{level = 10 : i32, message = "bph,bqh->bpq"}> : () -> ()
    %cst = arith.constant dense<0.000000e+00> : vector<1x8x8xf32>
    %6 = tpu.matmul %3, %5, %cst {dimension_numbers = #tpu.dot_dimension_numbers<[2], [2], [1], [1], [0, 0, 0, 1, 1, 1], [0], [0]>} : vector<1x8x32xf32>, vector<1x8x32xf32>, vector<1x8x8xf32> -> vector<1x8x8xf32>
    "tpu.trace_stop"() : () -> ()
    %7 = tpu.iota {dimensions = array<i32: 2>} : vector<1x1x8xi32>
    %c0_5 = arith.constant 0 : index
    %c0_6 = arith.constant 0 : index
    %c0_7 = arith.constant 0 : index
    %8 = vector.load %arg4[%c0_5, %c0_6, %c0_7] : memref<1x1x1xi32, #tpu.memory_space<vmem>>, vector<1x1x1xi32>
    %9 = vector.broadcast %8 : vector<1x1x1xi32> to vector<1x1x8xi32>
    %10 = arith.cmpi slt, %7, %9 : vector<1x1x8xi32>
    %11 = arith.extui %10 : vector<1x1x8xi1> to vector<1x1x8xi32>
    %12 = arith.sitofp %11 : vector<1x1x8xi32> to vector<1x1x8xf32>
    %13 = vector.broadcast %12 : vector<1x1x8xf32> to vector<1x8x8xf32>
    %14 = arith.mulf %6, %13 : vector<1x8x8xf32>
    %cst_8 = arith.constant dense<0xFF800000> : vector<1x8xf32>
    %15 = vector.multi_reduction <maximumf>, %14, %cst_8 [2] : vector<1x8x8xf32> to vector<1x8xf32>
    %16 = vector.shape_cast %15 : vector<1x8xf32> to vector<1x8x1xf32>
    %17 = vector.broadcast %16 : vector<1x8x1xf32> to vector<1x8x8xf32>
    %18 = arith.subf %14, %17 : vector<1x8x8xf32>
    %19 = math.exp %18 : vector<1x8x8xf32>
    %cst_9 = arith.constant dense<0.000000e+00> : vector<1x8xf32>
    %20 = vector.multi_reduction <add>, %19, %cst_9 [2] : vector<1x8x8xf32> to vector<1x8xf32>
    %21 = vector.shape_cast %20 : vector<1x8xf32> to vector<1x8x1xf32>
    %22 = tpu.reciprocal %21 {approx = true} : vector<1x8x1xf32> -> vector<1x8x1xf32>
    %23 = vector.broadcast %22 : vector<1x8x1xf32> to vector<1x8x8xf32>
    %24 = arith.mulf %19, %23 : vector<1x8x8xf32>
    %25 = vector.broadcast %12 : vector<1x1x8xf32> to vector<1x8x8xf32>
    %26 = arith.mulf %24, %25 : vector<1x8x8xf32>
    %cst_10 = arith.constant dense<0.000000e+00> : vector<1x8xf32>
    %27 = vector.multi_reduction <add>, %26, %cst_10 [2] : vector<1x8x8xf32> to vector<1x8xf32>
    %28 = vector.shape_cast %27 : vector<1x8xf32> to vector<1x8x1xf32>
    %cst_11 = arith.constant 9.99999982E-14 : f32
    %29 = vector.broadcast %cst_11 : f32 to vector<1x8x1xf32>
    %30 = arith.addf %28, %29 : vector<1x8x1xf32>
    %31 = tpu.reciprocal %30 : vector<1x8x1xf32> -> vector<1x8x1xf32>
    %32 = vector.broadcast %31 : vector<1x8x1xf32> to vector<1x8x8xf32>
    %33 = arith.mulf %26, %32 : vector<1x8x8xf32>
    %c0_12 = arith.constant 0 : index
    %c0_13 = arith.constant 0 : index
    %c0_14 = arith.constant 0 : index
    %34 = vector.load %arg3[%c0_12, %c0_13, %c0_14] : memref<1x8x32xf32, #tpu.memory_space<vmem>>, vector<1x8x32xf32>
    "tpu.trace_start"() <{level = 10 : i32, message = "bpq,bqh->bph"}> : () -> ()
    %cst_15 = arith.constant dense<0.000000e+00> : vector<1x8x32xf32>
    %35 = tpu.matmul %33, %34, %cst_15 {dimension_numbers = #tpu.dot_dimension_numbers<[2], [1], [1], [2], [0, 0, 0, 1, 1, 2], [0], [0]>} : vector<1x8x8xf32>, vector<1x8x32xf32>, vector<1x8x32xf32> -> vector<1x8x32xf32>
    "tpu.trace_stop"() : () -> ()
    %36 = vector.shape_cast %35 : vector<1x8x32xf32> to vector<8x32xf32>
    %c0_16 = arith.constant 0 : index
    %c0_17 = arith.constant 0 : index
    %37 = vector.load %arg7[%c0_16, %c0_17] : memref<32x32xf32, #tpu.memory_space<vmem>>, vector<32x32xf32>
    %cst_18 = arith.constant dense<0.000000e+00> : vector<8x32xf32>
    %38 = tpu.matmul %36, %37, %cst_18 {dimension_numbers = #tpu.dot_dimension_numbers<[1], [0], [0], [1], [0, 0, 1, 1], [], []>} : vector<8x32xf32>, vector<32x32xf32>, vector<8x32xf32> -> vector<8x32xf32>
    %c0_19 = arith.constant 0 : index
    %c0_20 = arith.constant 0 : index
    %39 = vector.load %arg8[%c0_19, %c0_20] : memref<1x32xf32, #tpu.memory_space<vmem>>, vector<1x32xf32>
    %40 = vector.broadcast %39 : vector<1x32xf32> to vector<8x32xf32>
    %41 = arith.addf %38, %40 : vector<8x32xf32>
    %cst_21 = arith.constant 0.000000e+00 : f32
    %42 = vector.broadcast %cst_21 : f32 to vector<8x32xf32>
    %43 = arith.maximumf %41, %42 : vector<8x32xf32>
    %44 = vector.shape_cast %43 : vector<8x32xf32> to vector<1x1x256xf32>
    %c0_22 = arith.constant 0 : index
    %c0_23 = arith.constant 0 : index
    %c0_24 = arith.constant 0 : index
    %45 = vector.load %arg9[%c0_22, %c0_23, %c0_24] : memref<1x1x256xf32, #tpu.memory_space<vmem>>, vector<1x1x256xf32>
    tpu.vector_store %arg9[%c0_22, %c0_23, %c0_24], %44 {strides = array<i32>} : memref<1x1x256xf32, #tpu.memory_space<vmem>>, vector<1x1x256xf32>,
    return
  }
  func.func @transform_0(%arg0: i32, %arg1: i32) -> (i32, i32, i32) {
    %c0_i32 = arith.constant 0 : i32
    %c0_i32_0 = arith.constant 0 : i32
    return %arg0, %arg1, %c0_i32 : i32, i32, i32
  }
  func.func @transform_1(%arg0: i32, %arg1: i32) -> (i32, i32, i32) {
    %c0_i32 = arith.constant 0 : i32
    %c0_i32_0 = arith.constant 0 : i32
    %c0_i32_1 = arith.constant 0 : i32
    return %arg0, %c0_i32, %c0_i32_0 : i32, i32, i32
  }
  func.func @transform_2(%arg0: i32, %arg1: i32) -> (i32, i32, i32) {
    %c0_i32 = arith.constant 0 : i32
    %c0_i32_0 = arith.constant 0 : i32
    %c0_i32_1 = arith.constant 0 : i32
    return %arg0, %c0_i32, %c0_i32_0 : i32, i32, i32
  }
  func.func @transform_3(%arg0: i32, %arg1: i32) -> (i32, i32) {
    %c0_i32 = arith.constant 0 : i32
    %c0_i32_0 = arith.constant 0 : i32
    %c0_i32_1 = arith.constant 0 : i32
    return %c0_i32, %c0_i32_0 : i32, i32
  }
  func.func @transform_4(%arg0: i32, %arg1: i32) -> (i32, i32) {
    %c0_i32 = arith.constant 0 : i32
    %c0_i32_0 = arith.constant 0 : i32
    %c0_i32_1 = arith.constant 0 : i32
    return %c0_i32, %c0_i32_0 : i32, i32
  }
  func.func @transform_5(%arg0: i32, %arg1: i32) -> (i32, i32) {
    %c0_i32 = arith.constant 0 : i32
    %c0_i32_0 = arith.constant 0 : i32
    %c0_i32_1 = arith.constant 0 : i32
    return %c0_i32, %c0_i32_0 : i32, i32
  }
  func.func @transform_6(%arg0: i32, %arg1: i32) -> (i32, i32) {
    %c0_i32 = arith.constant 0 : i32
    %c0_i32_0 = arith.constant 0 : i32
    %c0_i32_1 = arith.constant 0 : i32
    return %c0_i32, %c0_i32_0 : i32, i32
  }
  func.func @transform_7(%arg0: i32, %arg1: i32) -> (i32, i32, i32) {
    %c0_i32 = arith.constant 0 : i32
    %c0_i32_0 = arith.constant 0 : i32
    return %arg0, %c0_i32, %arg1 : i32, i32, i32
  }
}

module attributes {stable_mosaic.version = 11 : i64} {
  func.func @ssinglematch_kernel(%arg0: i32, %arg1: i32, %arg2: memref<1x8x32xf32, #tpu.memory_space<vmem>>, %arg3: memref<1x8x32xf32, #tpu.memory_space<vmem>>, %arg4: memref<1x1x1xi32, #tpu.memory_space<vmem>>, %arg5: memref<32x32xf32, #tpu.memory_space<vmem>>, %arg6: memref<1x32xf32, #tpu.memory_space<vmem>>, %arg7: memref<32x32xf32, #tpu.memory_space<vmem>>, %arg8: memref<1x32xf32, #tpu.memory_space<vmem>>, %arg9: memref<1x1x256xf32, #tpu.memory_space<vmem>>, %arg10: memref<8x32xf32, #tpu.memory_space<vmem>>) attributes {dimension_semantics = [#tpu.dimension_semantics<parallel>, #tpu.dimension_semantics<arbitrary>], iteration_bounds = array<i64: 2, 1>, scalar_prefetch = 0 : i64, scratch_operands = 1 : i64, tpu.core_type = #tpu.core_type<tc>, window_params = [{transform_indices = @transform_0, window_bounds = array<i64: 1, 8, 32>}, {transform_indices = @transform_1, window_bounds = array<i64: 1, 8, 32>}, {transform_indices = @transform_2, window_bounds = array<i64: 1, 1, 1>}, {pipeline_mode = #tpu.pipeline_mode<synchronous>, transform_indices = @transform_3, window_bounds = array<i64: 32, 32>}, {pipeline_mode = #tpu.pipeline_mode<synchronous>, transform_indices = @transform_4, window_bounds = array<i64: 1, 32>}, {pipeline_mode = #tpu.pipeline_mode<synchronous>, transform_indices = @transform_5, window_bounds = array<i64: 32, 32>}, {pipeline_mode = #tpu.pipeline_mode<synchronous>, transform_indices = @transform_6, window_bounds = array<i64: 1, 32>}, {transform_indices = @transform_7, window_bounds = array<i64: 1, 1, 256>}]} {
    %c0_i32 = arith.constant 0 : i32
    %0 = arith.cmpi eq, %arg1, %c0_i32 : i32
    %1 = arith.extui %0 : i1 to i32
    %c0_i32_0 = arith.constant 0 : i32
    %2 = arith.cmpi ne, %1, %c0_i32_0 : i32
    scf.if %2 {
      %c0_25 = arith.constant 0 : index
      %c0_26 = arith.constant 0 : index
      %c0_27 = arith.constant 0 : index
      %46 = vector.load %arg3[%c0_25, %c0_26, %c0_27] : memref<1x8x32xf32, #tpu.memory_space<vmem>>, vector<1x8x32xf32>
      %47 = vector.shape_cast %46 : vector<1x8x32xf32> to vector<8x32xf32>
      %c0_28 = arith.constant 0 : index
      %c0_29 = arith.constant 0 : index
      %48 = vector.load %arg5[%c0_28, %c0_29] : memref<32x32xf32, #tpu.memory_space<vmem>>, vector<32x32xf32>
      %cst_30 = arith.constant dense<0.000000e+00> : vector<8x32xf32>
      %49 = tpu.matmul %47, %48, %cst_30 {dimension_numbers = #tpu.dot_dimension_numbers<[1], [0], [0], [1], [0, 0, 1, 1], [], []>} : vector<8x32xf32>, vector<32x32xf32>, vector<8x32xf32> -> vector<8x32xf32>
      %c0_31 = arith.constant 0 : index
      %c0_32 = arith.constant 0 : index
      %50 = vector.load %arg6[%c0_31, %c0_32] : memref<1x32xf32, #tpu.memory_space<vmem>>, vector<1x32xf32>
      %51 = vector.broadcast %50 : vector<1x32xf32> to vector<8x32xf32>
      %52 = arith.addf %49, %51 : vector<8x32xf32>
      %c0_33 = arith.constant 0 : index
      %c0_34 = arith.constant 0 : index
      %53 = vector.load %arg10[%c0_33, %c0_34] : memref<8x32xf32, #tpu.memory_space<vmem>>, vector<8x32xf32>
      tpu.vector_store %arg10[%c0_33, %c0_34], %52 {strides = array<i32>} : memref<8x32xf32, #tpu.memory_space<vmem>>, vector<8x32xf32>,
    } else {
    }
    %c0 = arith.constant 0 : index
    %c0_1 = arith.constant 0 : index
    %c0_2 = arith.constant 0 : index
    %3 = vector.load %arg2[%c0, %c0_1, %c0_2] : memref<1x8x32xf32, #tpu.memory_space<vmem>>, vector<1x8x32xf32>
    %c0_3 = arith.constant 0 : index
    %c0_4 = arith.constant 0 : index
    %4 = vector.load %arg10[%c0_3, %c0_4] : memref<8x32xf32, #tpu.memory_space<vmem>>, vector<8x32xf32>
    %5 = vector.shape_cast %4 : vector<8x32xf32> to vector<1x8x32xf32>
    "tpu.trace_start"() <{level = 10 : i32, message = "bph,bqh->bpq"}> : () -> ()
    %cst = arith.constant dense<0.000000e+00> : vector<1x8x8xf32>
    %6 = tpu.matmul %3, %5, %cst {dimension_numbers = #tpu.dot_dimension_numbers<[2], [2], [1], [1], [0, 0, 0, 1, 1, 1], [0], [0]>} : vector<1x8x32xf32>, vector<1x8x32xf32>, vector<1x8x8xf32> -> vector<1x8x8xf32>
    "tpu.trace_stop"() : () -> ()
    %7 = tpu.iota {dimensions = array<i32: 2>} : vector<1x1x8xi32>
    %c0_5 = arith.constant 0 : index
    %c0_6 = arith.constant 0 : index
    %c0_7 = arith.constant 0 : index
    %8 = vector.load %arg4[%c0_5, %c0_6, %c0_7] : memref<1x1x1xi32, #tpu.memory_space<vmem>>, vector<1x1x1xi32>
    %9 = vector.broadcast %8 : vector<1x1x1xi32> to vector<1x1x8xi32>
    %10 = arith.cmpi slt, %7, %9 : vector<1x1x8xi32>
    %11 = arith.extui %10 : vector<1x1x8xi1> to vector<1x1x8xi32>
    %12 = arith.sitofp %11 : vector<1x1x8xi32> to vector<1x1x8xf32>
    %13 = vector.broadcast %12 : vector<1x1x8xf32> to vector<1x8x8xf32>
    %14 = arith.mulf %6, %13 : vector<1x8x8xf32>
    %cst_8 = arith.constant dense<0xFF800000> : vector<1x8xf32>
    %15 = vector.multi_reduction <maximumf>, %14, %cst_8 [2] : vector<1x8x8xf32> to vector<1x8xf32>
    %16 = vector.shape_cast %15 : vector<1x8xf32> to vector<1x8x1xf32>
    %17 = vector.broadcast %16 : vector<1x8x1xf32> to vector<1x8x8xf32>
    %18 = arith.subf %14, %17 : vector<1x8x8xf32>
    %19 = math.exp %18 : vector<1x8x8xf32>
    %cst_9 = arith.constant dense<0.000000e+00> : vector<1x8xf32>
    %20 = vector.multi_reduction <add>, %19, %cst_9 [2] : vector<1x8x8xf32> to vector<1x8xf32>
    %21 = vector.shape_cast %20 : vector<1x8xf32> to vector<1x8x1xf32>
    %22 = tpu.reciprocal %21 {approx = true} : vector<1x8x1xf32> -> vector<1x8x1xf32>
    %23 = vector.broadcast %22 : vector<1x8x1xf32> to vector<1x8x8xf32>
    %24 = arith.mulf %19, %23 : vector<1x8x8xf32>
    %25 = vector.broadcast %12 : vector<1x1x8xf32> to vector<1x8x8xf32>
    %26 = arith.mulf %24, %25 : vector<1x8x8xf32>
    %cst_10 = arith.constant dense<0.000000e+00> : vector<1x8xf32>
    %27 = vector.multi_reduction <add>, %26, %cst_10 [2] : vector<1x8x8xf32> to vector<1x8xf32>
    %28 = vector.shape_cast %27 : vector<1x8xf32> to vector<1x8x1xf32>
    %cst_11 = arith.constant 9.99999982E-14 : f32
    %29 = vector.broadcast %cst_11 : f32 to vector<1x8x1xf32>
    %30 = arith.addf %28, %29 : vector<1x8x1xf32>
    %31 = tpu.reciprocal %30 : vector<1x8x1xf32> -> vector<1x8x1xf32>
    %32 = vector.broadcast %31 : vector<1x8x1xf32> to vector<1x8x8xf32>
    %33 = arith.mulf %26, %32 : vector<1x8x8xf32>
    %c0_12 = arith.constant 0 : index
    %c0_13 = arith.constant 0 : index
    %c0_14 = arith.constant 0 : index
    %34 = vector.load %arg3[%c0_12, %c0_13, %c0_14] : memref<1x8x32xf32, #tpu.memory_space<vmem>>, vector<1x8x32xf32>
    "tpu.trace_start"() <{level = 10 : i32, message = "bpq,bqh->bph"}> : () -> ()
    %cst_15 = arith.constant dense<0.000000e+00> : vector<1x8x32xf32>
    %35 = tpu.matmul %33, %34, %cst_15 {dimension_numbers = #tpu.dot_dimension_numbers<[2], [1], [1], [2], [0, 0, 0, 1, 1, 2], [0], [0]>} : vector<1x8x8xf32>, vector<1x8x32xf32>, vector<1x8x32xf32> -> vector<1x8x32xf32>
    "tpu.trace_stop"() : () -> ()
    %36 = vector.shape_cast %35 : vector<1x8x32xf32> to vector<8x32xf32>
    %c0_16 = arith.constant 0 : index
    %c0_17 = arith.constant 0 : index
    %37 = vector.load %arg7[%c0_16, %c0_17] : memref<32x32xf32, #tpu.memory_space<vmem>>, vector<32x32xf32>
    %cst_18 = arith.constant dense<0.000000e+00> : vector<8x32xf32>
    %38 = tpu.matmul %36, %37, %cst_18 {dimension_numbers = #tpu.dot_dimension_numbers<[1], [0], [0], [1], [0, 0, 1, 1], [], []>} : vector<8x32xf32>, vector<32x32xf32>, vector<8x32xf32> -> vector<8x32xf32>
    %c0_19 = arith.constant 0 : index
    %c0_20 = arith.constant 0 : index
    %39 = vector.load %arg8[%c0_19, %c0_20] : memref<1x32xf32, #tpu.memory_space<vmem>>, vector<1x32xf32>
    %40 = vector.broadcast %39 : vector<1x32xf32> to vector<8x32xf32>
    %41 = arith.addf %38, %40 : vector<8x32xf32>
    %cst_21 = arith.constant 0.000000e+00 : f32
    %42 = vector.broadcast %cst_21 : f32 to vector<8x32xf32>
    %43 = arith.maximumf %41, %42 : vector<8x32xf32>
    %44 = vector.shape_cast %43 : vector<8x32xf32> to vector<1x1x256xf32>
    %c0_22 = arith.constant 0 : index
    %c0_23 = arith.constant 0 : index
    %c0_24 = arith.constant 0 : index
    %45 = vector.load %arg9[%c0_22, %c0_23, %c0_24] : memref<1x1x256xf32, #tpu.memory_space<vmem>>, vector<1x1x256xf32>
    tpu.vector_store %arg9[%c0_22, %c0_23, %c0_24], %44 {strides = array<i32>} : memref<1x1x256xf32, #tpu.memory_space<vmem>>, vector<1x1x256xf32>,
    return
  }
  func.func @transform_0(%arg0: i32, %arg1: i32) -> (i32, i32, i32) {
    %c0_i32 = arith.constant 0 : i32
    %c0_i32_0 = arith.constant 0 : i32
    return %arg0, %arg1, %c0_i32 : i32, i32, i32
  }
  func.func @transform_1(%arg0: i32, %arg1: i32) -> (i32, i32, i32) {
    %c0_i32 = arith.constant 0 : i32
    %c0_i32_0 = arith.constant 0 : i32
    %c0_i32_1 = arith.constant 0 : i32
    return %arg0, %c0_i32, %c0_i32_0 : i32, i32, i32
  }
  func.func @transform_2(%arg0: i32, %arg1: i32) -> (i32, i32, i32) {
    %c0_i32 = arith.constant 0 : i32
    %c0_i32_0 = arith.constant 0 : i32
    %c0_i32_1 = arith.constant 0 : i32
    return %arg0, %c0_i32, %c0_i32_0 : i32, i32, i32
  }
  func.func @transform_3(%arg0: i32, %arg1: i32) -> (i32, i32) {
    %c0_i32 = arith.constant 0 : i32
    %c0_i32_0 = arith.constant 0 : i32
    %c0_i32_1 = arith.constant 0 : i32
    return %c0_i32, %c0_i32_0 : i32, i32
  }
  func.func @transform_4(%arg0: i32, %arg1: i32) -> (i32, i32) {
    %c0_i32 = arith.constant 0 : i32
    %c0_i32_0 = arith.constant 0 : i32
    %c0_i32_1 = arith.constant 0 : i32
    return %c0_i32, %c0_i32_0 : i32, i32
  }
  func.func @transform_5(%arg0: i32, %arg1: i32) -> (i32, i32) {
    %c0_i32 = arith.constant 0 : i32
    %c0_i32_0 = arith.constant 0 : i32
    %c0_i32_1 = arith.constant 0 : i32
    return %c0_i32, %c0_i32_0 : i32, i32
  }
  func.func @transform_6(%arg0: i32, %arg1: i32) -> (i32, i32) {
    %c0_i32 = arith.constant 0 : i32
    %c0_i32_0 = arith.constant 0 : i32
    %c0_i32_1 = arith.constant 0 : i32
    return %c0_i32, %c0_i32_0 : i32, i32
  }
  func.func @transform_7(%arg0: i32, %arg1: i32) -> (i32, i32, i32) {
    %c0_i32 = arith.constant 0 : i32
    %c0_i32_0 = arith.constant 0 : i32
    return %arg0, %c0_i32, %arg1 : i32, i32, i32
  }
}

module attributes {stable_mosaic.version = 11 : i64} {
  func.func @ssinglematch_kernel(%arg0: i32, %arg1: i32, %arg2: memref<1x8x32xf32, #tpu.memory_space<vmem>>, %arg3: memref<1x8x32xf32, #tpu.memory_space<vmem>>, %arg4: memref<1x1x1xi32, #tpu.memory_space<vmem>>, %arg5: memref<32x32xf32, #tpu.memory_space<vmem>>, %arg6: memref<1x32xf32, #tpu.memory_space<vmem>>, %arg7: memref<32x32xf32, #tpu.memory_space<vmem>>, %arg8: memref<1x32xf32, #tpu.memory_space<vmem>>, %arg9: memref<1x8x32xf32, #tpu.memory_space<vmem>>, %arg10: memref<8x32xf32, #tpu.memory_space<vmem>>) attributes {dimension_semantics = [#tpu.dimension_semantics<parallel>, #tpu.dimension_semantics<arbitrary>], iteration_bounds = array<i64: 2, 1>, scalar_prefetch = 0 : i64, scratch_operands = 1 : i64, tpu.core_type = #tpu.core_type<tc>, window_params = [{transform_indices = @transform_0, window_bounds = array<i64: 1, 8, 32>}, {transform_indices = @transform_1, window_bounds = array<i64: 1, 8, 32>}, {transform_indices = @transform_2, window_bounds = array<i64: 1, 1, 1>}, {pipeline_mode = #tpu.pipeline_mode<synchronous>, transform_indices = @transform_3, window_bounds = array<i64: 32, 32>}, {pipeline_mode = #tpu.pipeline_mode<synchronous>, transform_indices = @transform_4, window_bounds = array<i64: 1, 32>}, {pipeline_mode = #tpu.pipeline_mode<synchronous>, transform_indices = @transform_5, window_bounds = array<i64: 32, 32>}, {pipeline_mode = #tpu.pipeline_mode<synchronous>, transform_indices = @transform_6, window_bounds = array<i64: 1, 32>}, {transform_indices = @transform_7, window_bounds = array<i64: 1, 8, 32>}]} {
    %c0_i32 = arith.constant 0 : i32
    %0 = arith.cmpi eq, %arg1, %c0_i32 : i32
    %1 = arith.extui %0 : i1 to i32
    %c0_i32_0 = arith.constant 0 : i32
    %2 = arith.cmpi ne, %1, %c0_i32_0 : i32
    scf.if %2 {
      %c0_25 = arith.constant 0 : index
      %c0_26 = arith.constant 0 : index
      %c0_27 = arith.constant 0 : index
      %46 = vector.load %arg3[%c0_25, %c0_26, %c0_27] : memref<1x8x32xf32, #tpu.memory_space<vmem>>, vector<1x8x32xf32>
      %47 = vector.shape_cast %46 : vector<1x8x32xf32> to vector<8x32xf32>
      %c0_28 = arith.constant 0 : index
      %c0_29 = arith.constant 0 : index
      %48 = vector.load %arg5[%c0_28, %c0_29] : memref<32x32xf32, #tpu.memory_space<vmem>>, vector<32x32xf32>
      %cst_30 = arith.constant dense<0.000000e+00> : vector<8x32xf32>
      %49 = tpu.matmul %47, %48, %cst_30 {dimension_numbers = #tpu.dot_dimension_numbers<[1], [0], [0], [1], [0, 0, 1, 1], [], []>} : vector<8x32xf32>, vector<32x32xf32>, vector<8x32xf32> -> vector<8x32xf32>
      %c0_31 = arith.constant 0 : index
      %c0_32 = arith.constant 0 : index
      %50 = vector.load %arg6[%c0_31, %c0_32] : memref<1x32xf32, #tpu.memory_space<vmem>>, vector<1x32xf32>
      %51 = vector.broadcast %50 : vector<1x32xf32> to vector<8x32xf32>
      %52 = arith.addf %49, %51 : vector<8x32xf32>
      %c0_33 = arith.constant 0 : index
      %c0_34 = arith.constant 0 : index
      %53 = vector.load %arg10[%c0_33, %c0_34] : memref<8x32xf32, #tpu.memory_space<vmem>>, vector<8x32xf32>
      tpu.vector_store %arg10[%c0_33, %c0_34], %52 {strides = array<i32>} : memref<8x32xf32, #tpu.memory_space<vmem>>, vector<8x32xf32>,
    } else {
    }
    %c0 = arith.constant 0 : index
    %c0_1 = arith.constant 0 : index
    %c0_2 = arith.constant 0 : index
    %3 = vector.load %arg2[%c0, %c0_1, %c0_2] : memref<1x8x32xf32, #tpu.memory_space<vmem>>, vector<1x8x32xf32>
    %c0_3 = arith.constant 0 : index
    %c0_4 = arith.constant 0 : index
    %4 = vector.load %arg10[%c0_3, %c0_4] : memref<8x32xf32, #tpu.memory_space<vmem>>, vector<8x32xf32>
    %5 = vector.shape_cast %4 : vector<8x32xf32> to vector<1x8x32xf32>
    "tpu.trace_start"() <{level = 10 : i32, message = "bph,bqh->bpq"}> : () -> ()
    %cst = arith.constant dense<0.000000e+00> : vector<1x8x8xf32>
    %6 = tpu.matmul %3, %5, %cst {dimension_numbers = #tpu.dot_dimension_numbers<[2], [2], [1], [1], [0, 0, 0, 1, 1, 1], [0], [0]>} : vector<1x8x32xf32>, vector<1x8x32xf32>, vector<1x8x8xf32> -> vector<1x8x8xf32>
    "tpu.trace_stop"() : () -> ()
    %7 = tpu.iota {dimensions = array<i32: 2>} : vector<1x1x8xi32>
    %c0_5 = arith.constant 0 : index
    %c0_6 = arith.constant 0 : index
    %c0_7 = arith.constant 0 : index
    %8 = vector.load %arg4[%c0_5, %c0_6, %c0_7] : memref<1x1x1xi32, #tpu.memory_space<vmem>>, vector<1x1x1xi32>
    %9 = vector.broadcast %8 : vector<1x1x1xi32> to vector<1x1x8xi32>
    %10 = arith.cmpi slt, %7, %9 : vector<1x1x8xi32>
    %11 = arith.extui %10 : vector<1x1x8xi1> to vector<1x1x8xi32>
    %12 = arith.sitofp %11 : vector<1x1x8xi32> to vector<1x1x8xf32>
    %13 = vector.broadcast %12 : vector<1x1x8xf32> to vector<1x8x8xf32>
    %14 = arith.mulf %6, %13 : vector<1x8x8xf32>
    %cst_8 = arith.constant dense<0xFF800000> : vector<1x8xf32>
    %15 = vector.multi_reduction <maximumf>, %14, %cst_8 [2] : vector<1x8x8xf32> to vector<1x8xf32>
    %16 = vector.shape_cast %15 : vector<1x8xf32> to vector<1x8x1xf32>
    %17 = vector.broadcast %16 : vector<1x8x1xf32> to vector<1x8x8xf32>
    %18 = arith.subf %14, %17 : vector<1x8x8xf32>
    %19 = math.exp %18 : vector<1x8x8xf32>
    %cst_9 = arith.constant dense<0.000000e+00> : vector<1x8xf32>
    %20 = vector.multi_reduction <add>, %19, %cst_9 [2] : vector<1x8x8xf32> to vector<1x8xf32>
    %21 = vector.shape_cast %20 : vector<1x8xf32> to vector<1x8x1xf32>
    %22 = tpu.reciprocal %21 {approx = true} : vector<1x8x1xf32> -> vector<1x8x1xf32>
    %23 = vector.broadcast %22 : vector<1x8x1xf32> to vector<1x8x8xf32>
    %24 = arith.mulf %19, %23 : vector<1x8x8xf32>
    %25 = vector.broadcast %12 : vector<1x1x8xf32> to vector<1x8x8xf32>
    %26 = arith.mulf %24, %25 : vector<1x8x8xf32>
    %cst_10 = arith.constant dense<0.000000e+00> : vector<1x8xf32>
    %27 = vector.multi_reduction <add>, %26, %cst_10 [2] : vector<1x8x8xf32> to vector<1x8xf32>
    %28 = vector.shape_cast %27 : vector<1x8xf32> to vector<1x8x1xf32>
    %cst_11 = arith.constant 9.99999982E-14 : f32
    %29 = vector.broadcast %cst_11 : f32 to vector<1x8x1xf32>
    %30 = arith.addf %28, %29 : vector<1x8x1xf32>
    %31 = tpu.reciprocal %30 : vector<1x8x1xf32> -> vector<1x8x1xf32>
    %32 = vector.broadcast %31 : vector<1x8x1xf32> to vector<1x8x8xf32>
    %33 = arith.mulf %26, %32 : vector<1x8x8xf32>
    %c0_12 = arith.constant 0 : index
    %c0_13 = arith.constant 0 : index
    %c0_14 = arith.constant 0 : index
    %34 = vector.load %arg3[%c0_12, %c0_13, %c0_14] : memref<1x8x32xf32, #tpu.memory_space<vmem>>, vector<1x8x32xf32>
    "tpu.trace_start"() <{level = 10 : i32, message = "bpq,bqh->bph"}> : () -> ()
    %cst_15 = arith.constant dense<0.000000e+00> : vector<1x8x32xf32>
    %35 = tpu.matmul %33, %34, %cst_15 {dimension_numbers = #tpu.dot_dimension_numbers<[2], [1], [1], [2], [0, 0, 0, 1, 1, 2], [0], [0]>} : vector<1x8x8xf32>, vector<1x8x32xf32>, vector<1x8x32xf32> -> vector<1x8x32xf32>
    "tpu.trace_stop"() : () -> ()
    %36 = vector.shape_cast %35 : vector<1x8x32xf32> to vector<8x32xf32>
    %c0_16 = arith.constant 0 : index
    %c0_17 = arith.constant 0 : index
    %37 = vector.load %arg7[%c0_16, %c0_17] : memref<32x32xf32, #tpu.memory_space<vmem>>, vector<32x32xf32>
    %cst_18 = arith.constant dense<0.000000e+00> : vector<8x32xf32>
    %38 = tpu.matmul %36, %37, %cst_18 {dimension_numbers = #tpu.dot_dimension_numbers<[1], [0], [0], [1], [0, 0, 1, 1], [], []>} : vector<8x32xf32>, vector<32x32xf32>, vector<8x32xf32> -> vector<8x32xf32>
    %c0_19 = arith.constant 0 : index
    %c0_20 = arith.constant 0 : index
    %39 = vector.load %arg8[%c0_19, %c0_20] : memref<1x32xf32, #tpu.memory_space<vmem>>, vector<1x32xf32>
    %40 = vector.broadcast %39 : vector<1x32xf32> to vector<8x32xf32>
    %41 = arith.addf %38, %40 : vector<8x32xf32>
    %cst_21 = arith.constant 0.000000e+00 : f32
    %42 = vector.broadcast %cst_21 : f32 to vector<8x32xf32>
    %43 = arith.maximumf %41, %42 : vector<8x32xf32>
    %44 = vector.shape_cast %43 : vector<8x32xf32> to vector<1x8x32xf32>
    %c0_22 = arith.constant 0 : index
    %c0_23 = arith.constant 0 : index
    %c0_24 = arith.constant 0 : index
    %45 = vector.load %arg9[%c0_22, %c0_23, %c0_24] : memref<1x8x32xf32, #tpu.memory_space<vmem>>, vector<1x8x32xf32>
    tpu.vector_store %arg9[%c0_22, %c0_23, %c0_24], %44 {strides = array<i32>} : memref<1x8x32xf32, #tpu.memory_space<vmem>>, vector<1x8x32xf32>,
    return
  }
  func.func @transform_0(%arg0: i32, %arg1: i32) -> (i32, i32, i32) {
    %c0_i32 = arith.constant 0 : i32
    %c0_i32_0 = arith.constant 0 : i32
    return %arg0, %arg1, %c0_i32 : i32, i32, i32
  }
  func.func @transform_1(%arg0: i32, %arg1: i32) -> (i32, i32, i32) {
    %c0_i32 = arith.constant 0 : i32
    %c0_i32_0 = arith.constant 0 : i32
    %c0_i32_1 = arith.constant 0 : i32
    return %arg0, %c0_i32, %c0_i32_0 : i32, i32, i32
  }
  func.func @transform_2(%arg0: i32, %arg1: i32) -> (i32, i32, i32) {
    %c0_i32 = arith.constant 0 : i32
    %c0_i32_0 = arith.constant 0 : i32
    %c0_i32_1 = arith.constant 0 : i32
    return %arg0, %c0_i32, %c0_i32_0 : i32, i32, i32
  }
  func.func @transform_3(%arg0: i32, %arg1: i32) -> (i32, i32) {
    %c0_i32 = arith.constant 0 : i32
    %c0_i32_0 = arith.constant 0 : i32
    %c0_i32_1 = arith.constant 0 : i32
    return %c0_i32, %c0_i32_0 : i32, i32
  }
  func.func @transform_4(%arg0: i32, %arg1: i32) -> (i32, i32) {
    %c0_i32 = arith.constant 0 : i32
    %c0_i32_0 = arith.constant 0 : i32
    %c0_i32_1 = arith.constant 0 : i32
    return %c0_i32, %c0_i32_0 : i32, i32
  }
  func.func @transform_5(%arg0: i32, %arg1: i32) -> (i32, i32) {
    %c0_i32 = arith.constant 0 : i32
    %c0_i32_0 = arith.constant 0 : i32
    %c0_i32_1 = arith.constant 0 : i32
    return %c0_i32, %c0_i32_0 : i32, i32
  }
  func.func @transform_6(%arg0: i32, %arg1: i32) -> (i32, i32) {
    %c0_i32 = arith.constant 0 : i32
    %c0_i32_0 = arith.constant 0 : i32
    %c0_i32_1 = arith.constant 0 : i32
    return %c0_i32, %c0_i32_0 : i32, i32
  }
  func.func @transform_7(%arg0: i32, %arg1: i32) -> (i32, i32, i32) {
    %c0_i32 = arith.constant 0 : i32
    %c0_i32_0 = arith.constant 0 : i32
    return %arg0, %arg1, %c0_i32 : i32, i32, i32
  }
}

module attributes {stable_mosaic.version = 11 : i64} {
  func.func @ssinglematch_kernel(%arg0: i32, %arg1: i32, %arg2: memref<1x8x32xf32, #tpu.memory_space<vmem>>, %arg3: memref<1x8x32xf32, #tpu.memory_space<vmem>>, %arg4: memref<1x1x1xi32, #tpu.memory_space<vmem>>, %arg5: memref<32x32xf32, #tpu.memory_space<vmem>>, %arg6: memref<1x32xf32, #tpu.memory_space<vmem>>, %arg7: memref<32x32xf32, #tpu.memory_space<vmem>>, %arg8: memref<1x32xf32, #tpu.memory_space<vmem>>, %arg9: memref<1x8x32xf32, #tpu.memory_space<vmem>>, %arg10: memref<8x32xf32, #tpu.memory_space<vmem>>) attributes {dimension_semantics = [#tpu.dimension_semantics<parallel>, #tpu.dimension_semantics<arbitrary>], iteration_bounds = array<i64: 2, 1>, scalar_prefetch = 0 : i64, scratch_operands = 1 : i64, tpu.core_type = #tpu.core_type<tc>, window_params = [{transform_indices = @transform_0, window_bounds = array<i64: 1, 8, 32>}, {transform_indices = @transform_1, window_bounds = array<i64: 1, 8, 32>}, {transform_indices = @transform_2, window_bounds = array<i64: 1, 1, 1>}, {pipeline_mode = #tpu.pipeline_mode<synchronous>, transform_indices = @transform_3, window_bounds = array<i64: 32, 32>}, {pipeline_mode = #tpu.pipeline_mode<synchronous>, transform_indices = @transform_4, window_bounds = array<i64: 1, 32>}, {pipeline_mode = #tpu.pipeline_mode<synchronous>, transform_indices = @transform_5, window_bounds = array<i64: 32, 32>}, {pipeline_mode = #tpu.pipeline_mode<synchronous>, transform_indices = @transform_6, window_bounds = array<i64: 1, 32>}, {transform_indices = @transform_7, window_bounds = array<i64: 1, 8, 32>}]} {
    %c0_i32 = arith.constant 0 : i32
    %0 = arith.cmpi eq, %arg1, %c0_i32 : i32
    %1 = arith.extui %0 : i1 to i32
    %c0_i32_0 = arith.constant 0 : i32
    %2 = arith.cmpi ne, %1, %c0_i32_0 : i32
    scf.if %2 {
      %c0_25 = arith.constant 0 : index
      %c0_26 = arith.constant 0 : index
      %c0_27 = arith.constant 0 : index
      %46 = vector.load %arg3[%c0_25, %c0_26, %c0_27] : memref<1x8x32xf32, #tpu.memory_space<vmem>>, vector<1x8x32xf32>
      %47 = vector.shape_cast %46 : vector<1x8x32xf32> to vector<8x32xf32>
      %c0_28 = arith.constant 0 : index
      %c0_29 = arith.constant 0 : index
      %48 = vector.load %arg5[%c0_28, %c0_29] : memref<32x32xf32, #tpu.memory_space<vmem>>, vector<32x32xf32>
      %cst_30 = arith.constant dense<0.000000e+00> : vector<8x32xf32>
      %49 = tpu.matmul %47, %48, %cst_30 {dimension_numbers = #tpu.dot_dimension_numbers<[1], [0], [0], [1], [0, 0, 1, 1], [], []>} : vector<8x32xf32>, vector<32x32xf32>, vector<8x32xf32> -> vector<8x32xf32>
      %c0_31 = arith.constant 0 : index
      %c0_32 = arith.constant 0 : index
      %50 = vector.load %arg6[%c0_31, %c0_32] : memref<1x32xf32, #tpu.memory_space<vmem>>, vector<1x32xf32>
      %51 = vector.broadcast %50 : vector<1x32xf32> to vector<8x32xf32>
      %52 = arith.addf %49, %51 : vector<8x32xf32>
      %c0_33 = arith.constant 0 : index
      %c0_34 = arith.constant 0 : index
      %53 = vector.load %arg10[%c0_33, %c0_34] : memref<8x32xf32, #tpu.memory_space<vmem>>, vector<8x32xf32>
      tpu.vector_store %arg10[%c0_33, %c0_34], %52 {strides = array<i32>} : memref<8x32xf32, #tpu.memory_space<vmem>>, vector<8x32xf32>,
    } else {
    }
    %c0 = arith.constant 0 : index
    %c0_1 = arith.constant 0 : index
    %c0_2 = arith.constant 0 : index
    %3 = vector.load %arg2[%c0, %c0_1, %c0_2] : memref<1x8x32xf32, #tpu.memory_space<vmem>>, vector<1x8x32xf32>
    %c0_3 = arith.constant 0 : index
    %c0_4 = arith.constant 0 : index
    %4 = vector.load %arg10[%c0_3, %c0_4] : memref<8x32xf32, #tpu.memory_space<vmem>>, vector<8x32xf32>
    %5 = vector.shape_cast %4 : vector<8x32xf32> to vector<1x8x32xf32>
    "tpu.trace_start"() <{level = 10 : i32, message = "bph,bqh->bpq"}> : () -> ()
    %cst = arith.constant dense<0.000000e+00> : vector<1x8x8xf32>
    %6 = tpu.matmul %3, %5, %cst {dimension_numbers = #tpu.dot_dimension_numbers<[2], [2], [1], [1], [0, 0, 0, 1, 1, 1], [0], [0]>} : vector<1x8x32xf32>, vector<1x8x32xf32>, vector<1x8x8xf32> -> vector<1x8x8xf32>
    "tpu.trace_stop"() : () -> ()
    %7 = tpu.iota {dimensions = array<i32: 2>} : vector<1x1x8xi32>
    %c0_5 = arith.constant 0 : index
    %c0_6 = arith.constant 0 : index
    %c0_7 = arith.constant 0 : index
    %8 = vector.load %arg4[%c0_5, %c0_6, %c0_7] : memref<1x1x1xi32, #tpu.memory_space<vmem>>, vector<1x1x1xi32>
    %9 = vector.broadcast %8 : vector<1x1x1xi32> to vector<1x1x8xi32>
    %10 = arith.cmpi slt, %7, %9 : vector<1x1x8xi32>
    %11 = arith.extui %10 : vector<1x1x8xi1> to vector<1x1x8xi32>
    %12 = arith.sitofp %11 : vector<1x1x8xi32> to vector<1x1x8xf32>
    %13 = vector.broadcast %12 : vector<1x1x8xf32> to vector<1x8x8xf32>
    %14 = arith.mulf %6, %13 : vector<1x8x8xf32>
    %cst_8 = arith.constant dense<0xFF800000> : vector<1x8xf32>
    %15 = vector.multi_reduction <maximumf>, %14, %cst_8 [2] : vector<1x8x8xf32> to vector<1x8xf32>
    %16 = vector.shape_cast %15 : vector<1x8xf32> to vector<1x8x1xf32>
    %17 = vector.broadcast %16 : vector<1x8x1xf32> to vector<1x8x8xf32>
    %18 = arith.subf %14, %17 : vector<1x8x8xf32>
    %19 = math.exp %18 : vector<1x8x8xf32>
    %cst_9 = arith.constant dense<0.000000e+00> : vector<1x8xf32>
    %20 = vector.multi_reduction <add>, %19, %cst_9 [2] : vector<1x8x8xf32> to vector<1x8xf32>
    %21 = vector.shape_cast %20 : vector<1x8xf32> to vector<1x8x1xf32>
    %22 = tpu.reciprocal %21 {approx = true} : vector<1x8x1xf32> -> vector<1x8x1xf32>
    %23 = vector.broadcast %22 : vector<1x8x1xf32> to vector<1x8x8xf32>
    %24 = arith.mulf %19, %23 : vector<1x8x8xf32>
    %25 = vector.broadcast %12 : vector<1x1x8xf32> to vector<1x8x8xf32>
    %26 = arith.mulf %24, %25 : vector<1x8x8xf32>
    %cst_10 = arith.constant dense<0.000000e+00> : vector<1x8xf32>
    %27 = vector.multi_reduction <add>, %26, %cst_10 [2] : vector<1x8x8xf32> to vector<1x8xf32>
    %28 = vector.shape_cast %27 : vector<1x8xf32> to vector<1x8x1xf32>
    %cst_11 = arith.constant 9.99999982E-14 : f32
    %29 = vector.broadcast %cst_11 : f32 to vector<1x8x1xf32>
    %30 = arith.addf %28, %29 : vector<1x8x1xf32>
    %31 = tpu.reciprocal %30 : vector<1x8x1xf32> -> vector<1x8x1xf32>
    %32 = vector.broadcast %31 : vector<1x8x1xf32> to vector<1x8x8xf32>
    %33 = arith.mulf %26, %32 : vector<1x8x8xf32>
    %c0_12 = arith.constant 0 : index
    %c0_13 = arith.constant 0 : index
    %c0_14 = arith.constant 0 : index
    %34 = vector.load %arg3[%c0_12, %c0_13, %c0_14] : memref<1x8x32xf32, #tpu.memory_space<vmem>>, vector<1x8x32xf32>
    "tpu.trace_start"() <{level = 10 : i32, message = "bpq,bqh->bph"}> : () -> ()
    %cst_15 = arith.constant dense<0.000000e+00> : vector<1x8x32xf32>
    %35 = tpu.matmul %33, %34, %cst_15 {dimension_numbers = #tpu.dot_dimension_numbers<[2], [1], [1], [2], [0, 0, 0, 1, 1, 2], [0], [0]>} : vector<1x8x8xf32>, vector<1x8x32xf32>, vector<1x8x32xf32> -> vector<1x8x32xf32>
    "tpu.trace_stop"() : () -> ()
    %36 = vector.shape_cast %35 : vector<1x8x32xf32> to vector<8x32xf32>
    %c0_16 = arith.constant 0 : index
    %c0_17 = arith.constant 0 : index
    %37 = vector.load %arg7[%c0_16, %c0_17] : memref<32x32xf32, #tpu.memory_space<vmem>>, vector<32x32xf32>
    %cst_18 = arith.constant dense<0.000000e+00> : vector<8x32xf32>
    %38 = tpu.matmul %36, %37, %cst_18 {dimension_numbers = #tpu.dot_dimension_numbers<[1], [0], [0], [1], [0, 0, 1, 1], [], []>} : vector<8x32xf32>, vector<32x32xf32>, vector<8x32xf32> -> vector<8x32xf32>
    %c0_19 = arith.constant 0 : index
    %c0_20 = arith.constant 0 : index
    %39 = vector.load %arg8[%c0_19, %c0_20] : memref<1x32xf32, #tpu.memory_space<vmem>>, vector<1x32xf32>
    %40 = vector.broadcast %39 : vector<1x32xf32> to vector<8x32xf32>
    %41 = arith.addf %38, %40 : vector<8x32xf32>
    %cst_21 = arith.constant 0.000000e+00 : f32
    %42 = vector.broadcast %cst_21 : f32 to vector<8x32xf32>
    %43 = arith.maximumf %41, %42 : vector<8x32xf32>
    %44 = vector.shape_cast %43 : vector<8x32xf32> to vector<1x8x32xf32>
    %c0_22 = arith.constant 0 : index
    %c0_23 = arith.constant 0 : index
    %c0_24 = arith.constant 0 : index
    %45 = vector.load %arg9[%c0_22, %c0_23, %c0_24] : memref<1x8x32xf32, #tpu.memory_space<vmem>>, vector<1x8x32xf32>
    tpu.vector_store %arg9[%c0_22, %c0_23, %c0_24], %44 {strides = array<i32>} : memref<1x8x32xf32, #tpu.memory_space<vmem>>, vector<1x8x32xf32>,
    return
  }
  func.func @transform_0(%arg0: i32, %arg1: i32) -> (i32, i32, i32) {
    %c0_i32 = arith.constant 0 : i32
    %c0_i32_0 = arith.constant 0 : i32
    return %arg0, %arg1, %c0_i32 : i32, i32, i32
  }
  func.func @transform_1(%arg0: i32, %arg1: i32) -> (i32, i32, i32) {
    %c0_i32 = arith.constant 0 : i32
    %c0_i32_0 = arith.constant 0 : i32
    %c0_i32_1 = arith.constant 0 : i32
    return %arg0, %c0_i32, %c0_i32_0 : i32, i32, i32
  }
  func.func @transform_2(%arg0: i32, %arg1: i32) -> (i32, i32, i32) {
    %c0_i32 = arith.constant 0 : i32
    %c0_i32_0 = arith.constant 0 : i32
    %c0_i32_1 = arith.constant 0 : i32
    return %arg0, %c0_i32, %c0_i32_0 : i32, i32, i32
  }
  func.func @transform_3(%arg0: i32, %arg1: i32) -> (i32, i32) {
    %c0_i32 = arith.constant 0 : i32
    %c0_i32_0 = arith.constant 0 : i32
    %c0_i32_1 = arith.constant 0 : i32
    return %c0_i32, %c0_i32_0 : i32, i32
  }
  func.func @transform_4(%arg0: i32, %arg1: i32) -> (i32, i32) {
    %c0_i32 = arith.constant 0 : i32
    %c0_i32_0 = arith.constant 0 : i32
    %c0_i32_1 = arith.constant 0 : i32
    return %c0_i32, %c0_i32_0 : i32, i32
  }
  func.func @transform_5(%arg0: i32, %arg1: i32) -> (i32, i32) {
    %c0_i32 = arith.constant 0 : i32
    %c0_i32_0 = arith.constant 0 : i32
    %c0_i32_1 = arith.constant 0 : i32
    return %c0_i32, %c0_i32_0 : i32, i32
  }
  func.func @transform_6(%arg0: i32, %arg1: i32) -> (i32, i32) {
    %c0_i32 = arith.constant 0 : i32
    %c0_i32_0 = arith.constant 0 : i32
    %c0_i32_1 = arith.constant 0 : i32
    return %c0_i32, %c0_i32_0 : i32, i32
  }
  func.func @transform_7(%arg0: i32, %arg1: i32) -> (i32, i32, i32) {
    %c0_i32 = arith.constant 0 : i32
    %c0_i32_0 = arith.constant 0 : i32
    return %arg0, %arg1, %c0_i32 : i32, i32, i32
  }
}

</mosaic_0001>

<llo_original>
// kernel: tpu_custom_call.1
$region0: #{tpu_custom_call.1}
  #allocation0 [shape = 'u32[]', space=smem, size = 0x4, offset = 0x4, fixed_abs, tag = 'smem constant byte address 0x4 - core index']
  #allocation1 [shape = 'u32[144,128]{1,0:T(1,128)}', space=vmem, size = 0x12000, scoped, tag = 'internal scratch']
  #allocation2 [shape = 'f32[8,32]{1,0:T(8,128)}', space=vmem, size = 0x1000, scoped, tag = 'scratch operand']
  %s0 = inlined_call_operand.hbm [shape: f32[2,8,32], index: 0, kind: input, shape index: {}]
  %s1 = inlined_call_operand.hbm [shape: f32[2,8,32], index: 1, kind: input, shape index: {}]
  %s2 = inlined_call_operand.vmem [shape: s32[2,1,1], index: 2, kind: input, shape index: {}]
  %s3 = inlined_call_operand.hbm [shape: f32[32,32], index: 3, kind: input, shape index: {}]
  %s4 = inlined_call_operand.vmem [shape: f32[1,32], index: 4, kind: input, shape index: {}]
  %s5 = inlined_call_operand.hbm [shape: f32[32,32], index: 5, kind: input, shape index: {}]
  %s6 = inlined_call_operand.vmem [shape: f32[1,32], index: 6, kind: input, shape index: {}]
  %s7 = inlined_call_operand.hbm [shape: f32[2,8,32], index: 7, kind: output, shape index: {}]
  %s8 = sld [smem:[#allocation0]]
  $region81: #{tpu_custom_call.1} parent=0
    _
  %s10 = ssub.s32 1, %s8
  %s11 = scalar_select 0, %s10, %s8
  $region1: #{tpu_custom_call.1} parent=0
    #allocation3 [shape = 'u8[8192]{0}', space=vmem, size = 0x2000, scoped, tag = 'input window, operand 0']
    #allocation4 [shape = 's32[2]{0}', space=sflag, size = 0x8, scoped, tag = 'scoped memory for tpu_custom_call.1']
    #allocation5 [shape = 's32[2]{0}', space=sflag, size = 0x8, scoped, tag = 'scoped memory for tpu_custom_call.1']
    #allocation6 [shape = 'u8[8192]{0}', space=vmem, size = 0x2000, scoped, tag = 'input window, operand 1']
    #allocation7 [shape = 's32[2]{0}', space=sflag, size = 0x8, scoped, tag = 'scoped memory for tpu_custom_call.1']
    #allocation8 [shape = 'u8[16384]{0}', space=vmem, size = 0x4000, scoped, tag = 'input window, operand 3, single buffered']
    #allocation9 [shape = 'u8[16384]{0}', space=vmem, size = 0x4000, scoped, tag = 'input window, operand 5, single buffered']
    #allocation10 [shape = 's32[1]{0}', space=sflag, size = 0x4, scoped, tag = 'scoped memory for tpu_custom_call.1']
    #allocation11 [shape = 'u8[8192]{0}', space=vmem, size = 0x2000, scoped, tag = 'output window, operand 0']
    %12 = vsyncpa [#allocation4], 0
    %s13 = scalar_lea.sflag [#allocation4], 1
    %14 = vsyncpa %s13, 0
    %15 = vsyncpa [#allocation7], 0
    %s16 = scalar_lea.sflag [#allocation7], 1
    %17 = vsyncpa %s16, 0
    %18 = vsyncpa [#allocation10], 0
    %19 = vsyncpa [#allocation5], 0
    %s20 = scalar_lea.sflag [#allocation5], 1
    %21 = vsyncpa %s20, 0
    loop: start=0, step=1, limit=4
    $region2: #{tpu_custom_call.1} parent=1 // loop_pre_header
      _
    $region3: #{tpu_custom_call.1} parent=1 // loop_header
      %s23 = sphi 0, %s27
      %p24 = scmp.ge.s32.totalorder %s23, 4
      %s30 = sphi 0, %s42
      %s31 = sphi 0, %s38
      %s32 = sphi 0, %s30
      %s33 = sphi 0, %s31
      %s34 = sphi 0, %s32
      %s35 = sphi 0, %s33
      %s47 = sphi 0, %s49
      %s50 = sphi 0, %s47
      %s51 = sphi 0, %s50
      %s67 = sphi 0, %s51
      %s73 = sphi 0, %s75
      %s76 = sphi 0, %s73
      %s77 = sphi 0, %s76
      %s93 = sphi 0, %s77
      %s99 = sphi 0, %s101
      %s102 = sphi 0, %s99
      %s103 = sphi 0, %s102
      %s119 = sphi 0, %s103
      %s123 = sphi 0, %s123
      %s125 = sphi 0, %s123
      %s126 = sphi 0, %s125
      %s140 = sphi 0, %s126
      %s144 = sphi 0, %s144
      %s146 = sphi 0, %s144
      %s147 = sphi 0, %s146
      %s161 = sphi 0, %s147
      %s165 = sphi 0, %s165
      %s167 = sphi 0, %s165
      %s168 = sphi 0, %s167
      %s182 = sphi 0, %s168
      %s186 = sphi 0, %s186
      %s188 = sphi 0, %s186
      %s189 = sphi 0, %s188
      %s203 = sphi 0, %s189
      %s211 = sphi 0, %s213
      %s214 = sphi 0, %s211
      %s215 = sphi 0, %s214
      %s231 = sphi 0, %s215
    $region4: #{tpu_custom_call.1} parent=1 // loop_header_branch
      %26 = sbr.rel (%p24) target = $region8
    $region5: #{tpu_custom_call.1} parent=1 // loop_body
      %s28 = ssub.s32 %s23, 1
      %s29 = ssub.s32 %s23, 2
      %s36 = sadd.s32 1, %s31
      %p37 = scmp.ge.s32.totalorder %s36, 1
      %s38 = scalar_select %p37, 0, %s36
      %s39 = sadd.s32 1, %s30
      %s40 = scalar_select %p37, %s39, %s30
      %p41 = scmp.ge.s32.totalorder %s40, 2
      %s42 = scalar_select %p41, 0, %s40
      %s43 = ssub.s32 %s30, %s42
      %s44 = ssub.s32 %s31, %s38
      %s45 = sor.u32 %s43, %s44
      %p46 = scmp.eq.s32.totalorder %s45, 0
      %s48 = sadd.s32 %s47, 1
      %s49 = scalar_select %p46, %s47, %s48
      %p52 = pneg %p46
      %p53 = scmp.eq.s32.totalorder %s23, 1
      %p54 = por %p52, %p53
      %p55 = scmp.ne.s32.totalorder %s47, %s50
      %p56 = scmp.eq.s32.totalorder %s23, 0
      %p57 = por %p55, %p56
      %p58 = scmp.ne.s32.totalorder %s47, %s50
      %p59 = scmp.eq.s32.totalorder %s28, 1
      %p60 = por %p58, %p59
      %p61 = scmp.ne.s32.totalorder %s50, %s51
      %p62 = scmp.eq.s32.totalorder %s28, 0
      %p63 = por %p61, %p62
      %p64 = scmp.ne.s32.totalorder %s50, %s51
      %p65 = scmp.eq.s32.totalorder %s29, 1
      %p66 = por %p64, %p65
      %p68 = scmp.ne.s32.totalorder %s51, %s67
      %p69 = scmp.eq.s32.totalorder %s29, 0
      %p70 = por %p68, %p69
      %s71 = ssub.s32 %s30, %s42
      %p72 = scmp.eq.s32.totalorder %s71, 0
      %s74 = sadd.s32 %s73, 1
      %s75 = scalar_select %p72, %s73, %s74
      %p78 = pneg %p72
      %p79 = scmp.eq.s32.totalorder %s23, 1
      %p80 = por %p78, %p79
      %p81 = scmp.ne.s32.totalorder %s73, %s76
      %p82 = scmp.eq.s32.totalorder %s23, 0
      %p83 = por %p81, %p82
      %p84 = scmp.ne.s32.totalorder %s73, %s76
      %p85 = scmp.eq.s32.totalorder %s28, 1
      %p86 = por %p84, %p85
      %p87 = scmp.ne.s32.totalorder %s76, %s77
      %p88 = scmp.eq.s32.totalorder %s28, 0
      %p89 = por %p87, %p88
      %p90 = scmp.ne.s32.totalorder %s76, %s77
      %p91 = scmp.eq.s32.totalorder %s29, 1
      %p92 = por %p90, %p91
      %p94 = scmp.ne.s32.totalorder %s77, %s93
      %p95 = scmp.eq.s32.totalorder %s29, 0
      %p96 = por %p94, %p95
      %s97 = ssub.s32 %s30, %s42
      %p98 = scmp.eq.s32.totalorder %s97, 0
      %s100 = sadd.s32 %s99, 1
      %s101 = scalar_select %p98, %s99, %s100
      %p104 = pneg %p98
      %p105 = scmp.eq.s32.totalorder %s23, 1
      %p106 = por %p104, %p105
      %p107 = scmp.ne.s32.totalorder %s99, %s102
      %p108 = scmp.eq.s32.totalorder %s23, 0
      %p109 = por %p107, %p108
      %p110 = scmp.ne.s32.totalorder %s99, %s102
      %p111 = scmp.eq.s32.totalorder %s28, 1
      %p112 = por %p110, %p111
      %p113 = scmp.ne.s32.totalorder %s102, %s103
      %p114 = scmp.eq.s32.totalorder %s28, 0
      %p115 = por %p113, %p114
      %p116 = scmp.ne.s32.totalorder %s102, %s103
      %p117 = scmp.eq.s32.totalorder %s29, 1
      %p118 = por %p116, %p117
      %p120 = scmp.ne.s32.totalorder %s103, %s119
      %p121 = scmp.eq.s32.totalorder %s29, 0
      %p122 = por %p120, %p121
      %s124 = sadd.s32 %s123, 1
      %p127 = scmp.eq.s32.totalorder %s23, 1
      %p128 = scmp.ne.s32.totalorder %s123, %s125
      %p129 = scmp.eq.s32.totalorder %s23, 0
      %p130 = por %p128, %p129
      %p131 = scmp.ne.s32.totalorder %s123, %s125
      %p132 = scmp.eq.s32.totalorder %s28, 1
      %p133 = por %p131, %p132
      %p134 = scmp.ne.s32.totalorder %s125, %s126
      %p135 = scmp.eq.s32.totalorder %s28, 0
      %p136 = por %p134, %p135
      %p137 = scmp.ne.s32.totalorder %s125, %s126
      %p138 = scmp.eq.s32.totalorder %s29, 1
      %p139 = por %p137, %p138
      %p141 = scmp.ne.s32.totalorder %s126, %s140
      %p142 = scmp.eq.s32.totalorder %s29, 0
      %p143 = por %p141, %p142
      %s145 = sadd.s32 %s144, 1
      %p148 = scmp.eq.s32.totalorder %s23, 1
      %p149 = scmp.ne.s32.totalorder %s144, %s146
      %p150 = scmp.eq.s32.totalorder %s23, 0
      %p151 = por %p149, %p150
      %p152 = scmp.ne.s32.totalorder %s144, %s146
      %p153 = scmp.eq.s32.totalorder %s28, 1
      %p154 = por %p152, %p153
      %p155 = scmp.ne.s32.totalorder %s146, %s147
      %p156 = scmp.eq.s32.totalorder %s28, 0
      %p157 = por %p155, %p156
      %p158 = scmp.ne.s32.totalorder %s146, %s147
      %p159 = scmp.eq.s32.totalorder %s29, 1
      %p160 = por %p158, %p159
      %p162 = scmp.ne.s32.totalorder %s147, %s161
      %p163 = scmp.eq.s32.totalorder %s29, 0
      %p164 = por %p162, %p163
      %s166 = sadd.s32 %s165, 1
      %p169 = scmp.eq.s32.totalorder %s23, 1
      %p170 = scmp.ne.s32.totalorder %s165, %s167
      %p171 = scmp.eq.s32.totalorder %s23, 0
      %p172 = por %p170, %p171
      %p173 = scmp.ne.s32.totalorder %s165, %s167
      %p174 = scmp.eq.s32.totalorder %s28, 1
      %p175 = por %p173, %p174
      %p176 = scmp.ne.s32.totalorder %s167, %s168
      %p177 = scmp.eq.s32.totalorder %s28, 0
      %p178 = por %p176, %p177
      %p179 = scmp.ne.s32.totalorder %s167, %s168
      %p180 = scmp.eq.s32.totalorder %s29, 1
      %p181 = por %p179, %p180
      %p183 = scmp.ne.s32.totalorder %s168, %s182
      %p184 = scmp.eq.s32.totalorder %s29, 0
      %p185 = por %p183, %p184
      %s187 = sadd.s32 %s186, 1
      %p190 = scmp.eq.s32.totalorder %s23, 1
      %p191 = scmp.ne.s32.totalorder %s186, %s188
      %p192 = scmp.eq.s32.totalorder %s23, 0
      %p193 = por %p191, %p192
      %p194 = scmp.ne.s32.totalorder %s186, %s188
      %p195 = scmp.eq.s32.totalorder %s28, 1
      %p196 = por %p194, %p195
      %p197 = scmp.ne.s32.totalorder %s188, %s189
      %p198 = scmp.eq.s32.totalorder %s28, 0
      %p199 = por %p197, %p198
      %p200 = scmp.ne.s32.totalorder %s188, %s189
      %p201 = scmp.eq.s32.totalorder %s29, 1
      %p202 = por %p200, %p201
      %p204 = scmp.ne.s32.totalorder %s189, %s203
      %p205 = scmp.eq.s32.totalorder %s29, 0
      %p206 = por %p204, %p205
      %s207 = ssub.s32 %s30, %s42
      %s208 = ssub.s32 %s31, %s38
      %s209 = sor.u32 %s207, %s208
      %p210 = scmp.eq.s32.totalorder %s209, 0
      %s212 = sadd.s32 %s211, 1
      %s213 = scalar_select %p210, %s211, %s212
      %p216 = pneg %p210
      %p217 = scmp.eq.s32.totalorder %s23, 1
      %p218 = por %p216, %p217
      %p219 = scmp.ne.s32.totalorder %s211, %s214
      %p220 = scmp.eq.s32.totalorder %s23, 0
      %p221 = por %p219, %p220
      %p222 = scmp.ne.s32.totalorder %s211, %s214
      %p223 = scmp.eq.s32.totalorder %s28, 1
      %p224 = por %p222, %p223
      %p225 = scmp.ne.s32.totalorder %s214, %s215
      %p226 = scmp.eq.s32.totalorder %s28, 0
      %p227 = por %p225, %p226
      %p228 = scmp.ne.s32.totalorder %s214, %s215
      %p229 = scmp.eq.s32.totalorder %s29, 1
      %p230 = por %p228, %p229
      %p232 = scmp.ne.s32.totalorder %s215, %s231
      %p233 = scmp.eq.s32.totalorder %s29, 0
      %p234 = por %p232, %p233
      %p235 = scmp.le.s32.totalorder 1, %s23
      %p236 = scmp.lt.s32.totalorder %s23, 3
      %p237 = pnand %p235, %p236
      %p238 = pneg %p237
      // Predicated region
      $region9: #{tpu_custom_call.1} parent=5 // pred_check
        _
      $region10: #{tpu_custom_call.1} parent=5 // pred_check_branch
        %240 = sbr.rel (%p237) target = $region12
      $region11: #{tpu_custom_call.1} parent=5 // pred_region
        %s241 = ssub.s32 %s23, 1
        // Predicated region
        $region13: #{tpu_custom_call.1} parent=11 // pred_check
          %p242 = pneg %p136
        $region14: #{tpu_custom_call.1} parent=11 // pred_check_branch
          %244 = sbr.rel (%p242) target = $region16
        $region15: #{tpu_custom_call.1} parent=11 // pred_region
          %s246 = ssub.s32 512, 512
          %247 = vsyncadd [#allocation7], %s246
          %s248 = sshll.u32 [#allocation8], 4
          %s249 = int_to_ptr.vmem [resolvable:$true] %s248
          %254 = dma.hbm_to_vmem [thread:$0]  %s3, 512, %s249, [#allocation7], 128, 128, 8
        $region16: #{tpu_custom_call.1} parent=11 // pred_fallthru
          _
        // Predicated region
        $region17: #{tpu_custom_call.1} parent=11 // pred_check
          %p255 = pneg %p157
        $region18: #{tpu_custom_call.1} parent=11 // pred_check_branch
          %257 = sbr.rel (%p255) target = $region20
        $region19: #{tpu_custom_call.1} parent=11 // pred_region
          _
        $region20: #{tpu_custom_call.1} parent=11 // pred_fallthru
          _
        // Predicated region
        $region21: #{tpu_custom_call.1} parent=11 // pred_check
          %p258 = pneg %p178
        $region22: #{tpu_custom_call.1} parent=11 // pred_check_branch
          %260 = sbr.rel (%p258) target = $region24
        $region23: #{tpu_custom_call.1} parent=11 // pred_region
          %s262 = ssub.s32 512, 512
          %263 = vsyncadd [#allocation10], %s262
          %s264 = sshll.u32 [#allocation9], 4
          %s265 = int_to_ptr.vmem [resolvable:$true] %s264
          %270 = dma.hbm_to_vmem [thread:$0]  %s5, 512, %s265, [#allocation10], 128, 128, 8
        $region24: #{tpu_custom_call.1} parent=11 // pred_fallthru
          _
        // Predicated region
        $region25: #{tpu_custom_call.1} parent=11 // pred_check
          %p271 = pneg %p199
        $region26: #{tpu_custom_call.1} parent=11 // pred_check_branch
          %273 = sbr.rel (%p271) target = $region28
        $region27: #{tpu_custom_call.1} parent=11 // pred_region
          _
        $region28: #{tpu_custom_call.1} parent=11 // pred_fallthru
          _
      $region12: #{tpu_custom_call.1} parent=5 // pred_fallthru
        _
      %p274 = scmp.lt.s32.totalorder %s23, 2
      // Predicated region
      $region29: #{tpu_custom_call.1} parent=5 // pred_check
        %p275 = pneg %p274
      $region30: #{tpu_custom_call.1} parent=5 // pred_check_branch
        %277 = sbr.rel (%p275) target = $region32
      $region31: #{tpu_custom_call.1} parent=5 // pred_region
        // Predicated region
        $region33: #{tpu_custom_call.1} parent=31 // pred_check
          %p278 = pneg %p57
        $region34: #{tpu_custom_call.1} parent=31 // pred_check_branch
          %280 = sbr.rel (%p278) target = $region36
        $region35: #{tpu_custom_call.1} parent=31 // pred_region
          %s281 = sand.u32 %s47, 1
          %s282 = scalar_lea.sflag [#allocation4], %s281
          %s283 = sand.u32 %s47, 1
          %s284 = smul.addr %s283, 8
          %s285 = scalar_lea.vmem [#allocation3], %s284
          %s287 = ssub.s32 128, 128
          %288 = vsyncadd %s282, %s287
          %s289 = sadd.s32 %s31, %s30
          %s290 = smul.addr %s289, 128
          %s291 = scalar_lea.hbm %s0, %s290
          %s293 = sshll.u32 %s285, 4
          %s294 = int_to_ptr.vmem [resolvable:$true] %s293
          %296 = dma.hbm_to_vmem [thread:$0]  %s291, 128, %s294, %s282
        $region36: #{tpu_custom_call.1} parent=31 // pred_fallthru
          _
        // Predicated region
        $region37: #{tpu_custom_call.1} parent=31 // pred_check
          %p297 = pneg %p83
        $region38: #{tpu_custom_call.1} parent=31 // pred_check_branch
          %299 = sbr.rel (%p297) target = $region40
        $region39: #{tpu_custom_call.1} parent=31 // pred_region
          %s300 = sand.u32 %s23, 1
          %s301 = scalar_lea.sflag [#allocation7], %s300
          %s302 = sand.u32 %s73, 1
          %s303 = smul.addr %s302, 8
          %s304 = scalar_lea.vmem [#allocation6], %s303
          %s306 = ssub.s32 128, 128
          %307 = vsyncadd %s301, %s306
          %s308 = smul.addr %s30, 128
          %s309 = scalar_lea.hbm %s1, %s308
          %s311 = sshll.u32 %s304, 4
          %s312 = int_to_ptr.vmem [resolvable:$true] %s311
          %314 = dma.hbm_to_vmem [thread:$0]  %s309, 128, %s312, %s301
        $region40: #{tpu_custom_call.1} parent=31 // pred_fallthru
          _
        // Predicated region
        $region41: #{tpu_custom_call.1} parent=31 // pred_check
          %p315 = pneg %p109
        $region42: #{tpu_custom_call.1} parent=31 // pred_check_branch
          %317 = sbr.rel (%p315) target = $region44
        $region43: #{tpu_custom_call.1} parent=31 // pred_region
          %p318 = scmp.lt.s32.totalorder %s30, 1
          %s319 = scalar_select %p318, %s30, 1
          %s320 = scalar_lea.vmem %s2, %s319
        $region44: #{tpu_custom_call.1} parent=31 // pred_fallthru
          _
      $region32: #{tpu_custom_call.1} parent=5 // pred_fallthru
        _
      %p321 = scmp.le.s32.totalorder 1, %s23
      %p322 = scmp.lt.s32.totalorder %s23, 3
      %p323 = pnand %p321, %p322
      %p324 = pneg %p323
      // Predicated region
      $region45: #{tpu_custom_call.1} parent=5 // pred_check
        _
      $region46: #{tpu_custom_call.1} parent=5 // pred_check_branch
        %326 = sbr.rel (%p323) target = $region48
      $region47: #{tpu_custom_call.1} parent=5 // pred_region
        %s327 = ssub.s32 %s23, 1
        %s328 = sand.u32 %s50, 1
        %s329 = scalar_lea.sflag [#allocation4], %s328
        %s330 = sand.u32 %s50, 1
        %s331 = smul.addr %s330, 8
        %s332 = scalar_lea.vmem [#allocation3], %s331
        // Predicated region
        $region49: #{tpu_custom_call.1} parent=47 // pred_check
          %p333 = pneg %p63
        $region50: #{tpu_custom_call.1} parent=47 // pred_check_branch
          %335 = sbr.rel (%p333) target = $region52
        $region51: #{tpu_custom_call.1} parent=47 // pred_region
          %336 = dma.done %s329, 128
        $region52: #{tpu_custom_call.1} parent=47 // pred_fallthru
          _
        %s337 = sand.u32 %s28, 1
        %s338 = scalar_lea.sflag [#allocation7], %s337
        %s339 = sand.u32 %s76, 1
        %s340 = smul.addr %s339, 8
        %s341 = scalar_lea.vmem [#allocation6], %s340
        // Predicated region
        $region53: #{tpu_custom_call.1} parent=47 // pred_check
          %p342 = pneg %p89
        $region54: #{tpu_custom_call.1} parent=47 // pred_check_branch
          %344 = sbr.rel (%p342) target = $region56
        $region55: #{tpu_custom_call.1} parent=47 // pred_region
          %345 = dma.done %s338, 128
        $region56: #{tpu_custom_call.1} parent=47 // pred_fallthru
          _
        // Predicated region
        $region57: #{tpu_custom_call.1} parent=47 // pred_check
          %p346 = pneg %p136
        $region58: #{tpu_custom_call.1} parent=47 // pred_check_branch
          %348 = sbr.rel (%p346) target = $region60
        $region59: #{tpu_custom_call.1} parent=47 // pred_region
          %349 = dma.done [#allocation7], 512
        $region60: #{tpu_custom_call.1} parent=47 // pred_fallthru
          _
        // Predicated region
        $region61: #{tpu_custom_call.1} parent=47 // pred_check
          %p350 = pneg %p178
        $region62: #{tpu_custom_call.1} parent=47 // pred_check_branch
          %352 = sbr.rel (%p350) target = $region64
        $region63: #{tpu_custom_call.1} parent=47 // pred_region
          %353 = dma.done [#allocation10], 512
        $region64: #{tpu_custom_call.1} parent=47 // pred_fallthru
          _
        %s354 = sand.u32 %s50, 1
        %s355 = scalar_lea.sflag [#allocation4], %s354
        %s356 = sand.u32 %s50, 1
        %s357 = smul.addr %s356, 8
        %s358 = scalar_lea.vmem [#allocation3], %s357
        %p359 = pneg %p63
        %p360 = pneg %p60
        %s361 = sand.u32 %s28, 1
        %s362 = scalar_lea.sflag [#allocation7], %s361
        %s363 = sand.u32 %s76, 1
        %s364 = smul.addr %s363, 8
        %s365 = scalar_lea.vmem [#allocation6], %s364
        %p366 = pneg %p89
        %p367 = pneg %p86
        %p368 = scmp.lt.s32.totalorder %s32, 1
        %s369 = scalar_select %p368, %s32, 1
        %s370 = scalar_lea.vmem %s2, %s369
        %p371 = pneg %p115
        %p372 = pneg %p112
        %p373 = pneg %p136
        %p374 = pneg %p133
        %p375 = pneg %p157
        %p376 = pneg %p154
        %p377 = pneg %p178
        %p378 = pneg %p175
        %p379 = pneg %p199
        %p380 = pneg %p196
        %p381 = pneg %p227
        %p382 = pneg %p224
        %s383 = sand.u32 %s214, 1
        %s384 = scalar_lea.sflag [#allocation5], %s383
        %s385 = sand.u32 %s214, 1
        %s386 = smul.addr %s385, 8
        %s387 = scalar_lea.vmem [#allocation11], %s386
        %p388 = scmp.lt.s32.totalorder %s32, 1
        %s389 = scalar_select %p388, %s32, 1
        %s390 = scalar_lea.vmem %s2, %s389
        %p391 = scmp.eq.s32.totalorder %s33, 0
        // Predicated region
        $region65: #{tpu_custom_call.1} parent=47 // pred_check
          %p392 = pneg %p391
        $region66: #{tpu_custom_call.1} parent=47 // pred_check_branch
          %394 = sbr.rel (%p392) target = $region68
        $region67: #{tpu_custom_call.1} parent=47 // pred_region
          %v395 = vld [vmem:[%s341] sm:$0xff]
          %v396 = vld [vmem:[#allocation8] sm:$0xff]
          %v397 = vld [vmem:[#allocation8 + $0x8] sm:$0xff]
          %v398 = vld [vmem:[#allocation8 + $0x10] sm:$0xff]
          %v399 = vld [vmem:[#allocation8 + $0x18] sm:$0xff]
          %v400 = vld [vmem:[%s4] sm:$0x1]
          %v402 = vlaneseq
          %v403 = vshrl.u32 %v402, 7
          %v404 = vsub.s32 0, %v403
          %v405 = vrot.slane %v400, %v404
          %vm407 = vcmask 261120
          %v409 = vsel %vm407, %v395, 0
          %411 = vmatprep.subr.mxu0 0.0
          %412 = vmatpush1.msra.mxu0 0.0
          %413 = vmatprep.subr.mxu0 0.0
          %414 = vmatpush1.msra.mxu0 0.0
          %415 = vmatprep.subr.mxu0 0.0
          %416 = vmatpush1.msra.mxu0 0.0
          %417 = vmatprep.subr.mxu0 0.0
          %418 = vmatpush1.msra.mxu0 0.0
          %419 = vmatprep.subr.mxu0 0.0
          %420 = vmatpush1.msra.mxu0 0.0
          %421 = vmatprep.subr.mxu0 0.0
          %422 = vmatpush1.msra.mxu0 0.0
          %423 = vmatprep.subr.mxu0 0.0
          %424 = vmatpush1.msra.mxu0 0.0
          %425 = vmatprep.subr.mxu0 0.0
          %426 = vmatpush1.msra.mxu0 0.0
          %427 = vmatprep.subr.mxu0 0.0
          %428 = vmatpush1.msra.mxu0 0.0
          %429 = vmatprep.subr.mxu0 0.0
          %430 = vmatpush1.msra.mxu0 0.0
          %431 = vmatprep.subr.mxu0 0.0
          %432 = vmatpush1.msra.mxu0 0.0
          %433 = vmatprep.subr.mxu0 0.0
          %434 = vmatpush1.msra.mxu0 0.0
          %435 = vmatprep.subr.mxu0 0.0
          %436 = vmatpush1.msra.mxu0 %v399
          %437 = vmatprep.subr.mxu0 0.0
          %438 = vmatpush1.msra.mxu0 %v398
          %439 = vmatprep.subr.mxu0 0.0
          %440 = vmatpush1.msra.mxu0 %v397
          %441 = vmatprep.subr.mxu0 0.0
          %442 = vmatpush1.msra.mxu0 %v396
          %443 = vmatprep.subr.mxu0 0.0
          %444 = vmatpush2.msra.mxu0 0.0
          %445 = vmatprep.subr.mxu0 0.0
          %446 = vmatpush2.msra.mxu0 0.0
          %447 = vmatprep.subr.mxu0 0.0
          %448 = vmatpush2.msra.mxu0 0.0
          %449 = vmatprep.subr.mxu0 0.0
          %450 = vmatpush2.msra.mxu0 0.0
          %451 = vmatprep.subr.mxu0 0.0
          %452 = vmatpush2.msra.mxu0 0.0
          %453 = vmatprep.subr.mxu0 0.0
          %454 = vmatpush2.msra.mxu0 0.0
          %455 = vmatprep.subr.mxu0 0.0
          %456 = vmatpush2.msra.mxu0 0.0
          %457 = vmatprep.subr.mxu0 0.0
          %458 = vmatpush2.msra.mxu0 0.0
          %459 = vmatprep.subr.mxu0 0.0
          %460 = vmatpush2.msra.mxu0 0.0
          %461 = vmatprep.subr.mxu0 0.0
          %462 = vmatpush2.msra.mxu0 0.0
          %463 = vmatprep.subr.mxu0 0.0
          %464 = vmatpush2.msra.mxu0 0.0
          %465 = vmatprep.subr.mxu0 0.0
          %466 = vmatpush2.msra.mxu0 0.0
          %467 = vmatprep.subr.mxu0 0.0
          %468 = vmatpush2.msra.mxu0 0.0
          %469 = vmatprep.subr.mxu0 0.0
          %470 = vmatpush2.msra.mxu0 0.0
          %471 = vmatprep.subr.mxu0 0.0
          %472 = vmatpush2.msra.mxu0 0.0
          %473 = vmatprep.subr.mxu0 0.0
          %474 = vmatpush2.msra.mxu0 0.0
          %475 = vmatprep.mubr.f32.mxu0 0.0
          %476 = vmatmul.mubr.f32.gmra.mxu0 %v409
          %v477 = vpop.f32.mrf.mxu0
          %v478 = vadd.f32 %v405, %v477
          %v479 = vpop.f32.mrf.mxu0
          %480 = vdwg.mxu0
          %481 = vst.msk [vmem:[#allocation2] sm:$0xff] %vm407, %v478
        $region68: #{tpu_custom_call.1} parent=47 // pred_fallthru
          _
        %v482 = vld [vmem:[%s332] sm:$0xff]
        %v483 = vld [vmem:[#allocation2] sm:$0xff]
        %vm484 = vcmask 261120
        %v486 = vsel %vm484, %v482, 0
        %v489 = vsel %vm484, %v483, 0
        %491 = vmatprep.subr.mxu0 0.0
        %492 = vmatpush1.xpose.msra.mxu0 0.0
        %493 = vmatprep.subr.mxu0 0.0
        %494 = vmatpush1.xpose.msra.mxu0 0.0
        %495 = vmatprep.subr.mxu0 0.0
        %496 = vmatpush1.xpose.msra.mxu0 0.0
        %497 = vmatprep.subr.mxu0 0.0
        %498 = vmatpush1.xpose.msra.mxu0 0.0
        %499 = vmatprep.subr.mxu0 0.0
        %500 = vmatpush1.xpose.msra.mxu0 0.0
        %501 = vmatprep.subr.mxu0 0.0
        %502 = vmatpush1.xpose.msra.mxu0 0.0
        %503 = vmatprep.subr.mxu0 0.0
        %504 = vmatpush1.xpose.msra.mxu0 0.0
        %505 = vmatprep.subr.mxu0 0.0
        %506 = vmatpush1.xpose.msra.mxu0 0.0
        %507 = vmatprep.subr.mxu0 0.0
        %508 = vmatpush1.xpose.msra.mxu0 0.0
        %509 = vmatprep.subr.mxu0 0.0
        %510 = vmatpush1.xpose.msra.mxu0 0.0
        %511 = vmatprep.subr.mxu0 0.0
        %512 = vmatpush1.xpose.msra.mxu0 0.0
        %513 = vmatprep.subr.mxu0 0.0
        %514 = vmatpush1.xpose.msra.mxu0 0.0
        %515 = vmatprep.subr.mxu0 0.0
        %516 = vmatpush1.xpose.msra.mxu0 0.0
        %517 = vmatprep.subr.mxu0 0.0
        %518 = vmatpush1.xpose.msra.mxu0 0.0
        %519 = vmatprep.subr.mxu0 0.0
        %520 = vmatpush1.xpose.msra.mxu0 0.0
        %521 = vmatprep.subr.mxu0 0.0
        %522 = vmatpush1.xpose.msra.mxu0 %v489
        %523 = vmatprep.subr.mxu0 0.0
        %524 = vmatpush2.xpose.msra.mxu0 0.0
        %525 = vmatprep.subr.mxu0 0.0
        %526 = vmatpush2.xpose.msra.mxu0 0.0
        %527 = vmatprep.subr.mxu0 0.0
        %528 = vmatpush2.xpose.msra.mxu0 0.0
        %529 = vmatprep.subr.mxu0 0.0
        %530 = vmatpush2.xpose.msra.mxu0 0.0
        %531 = vmatprep.subr.mxu0 0.0
        %532 = vmatpush2.xpose.msra.mxu0 0.0
        %533 = vmatprep.subr.mxu0 0.0
        %534 = vmatpush2.xpose.msra.mxu0 0.0
        %535 = vmatprep.subr.mxu0 0.0
        %536 = vmatpush2.xpose.msra.mxu0 0.0
        %537 = vmatprep.subr.mxu0 0.0
        %538 = vmatpush2.xpose.msra.mxu0 0.0
        %539 = vmatprep.subr.mxu0 0.0
        %540 = vmatpush2.xpose.msra.mxu0 0.0
        %541 = vmatprep.subr.mxu0 0.0
        %542 = vmatpush2.xpose.msra.mxu0 0.0
        %543 = vmatprep.subr.mxu0 0.0
        %544 = vmatpush2.xpose.msra.mxu0 0.0
        %545 = vmatprep.subr.mxu0 0.0
        %546 = vmatpush2.xpose.msra.mxu0 0.0
        %547 = vmatprep.subr.mxu0 0.0
        %548 = vmatpush2.xpose.msra.mxu0 0.0
        %549 = vmatprep.subr.mxu0 0.0
        %550 = vmatpush2.xpose.msra.mxu0 0.0
        %551 = vmatprep.subr.mxu0 0.0
        %552 = vmatpush2.xpose.msra.mxu0 0.0
        %553 = vmatprep.subr.mxu0 0.0
        %554 = vmatpush2.xpose.msra.mxu0 0.0
        %555 = vmatprep.mubr.f32.mxu0 0.0
        %556 = vmatmul.mubr.f32.gmra.mxu0 %v486
        %v557 = vpop.f32.mrf.mxu0
        %v558 = vadd.f32 0.0, %v557
        %v559 = vpop.f32.mrf.mxu0
        %560 = vdwg.mxu0
        %v561 = vlaneseq
        %v562 = vand.u32 %v561, 127
        %v563 = vld [vmem:[%s390] sm:$0x1]
        %564 = vset.pattern.permute.xlu0 0
        %565 = vperm.xlu0 %564, %v563
        %v566 = vpop.permute.xlu0 %565
        %v567 = vlaneseq
        %v568 = vshrl.u32 %v567, 7
        %v569 = vsub.s32 0, %v568
        %v570 = vrot.slane %v566, %v569
        %vm571 = vcmp.lt.s32.totalorder %v562, %v570
        %v572 = vsel %vm571, 1, 0
        %v573 = vcvt.s32.f32 %v572
        %v574 = vmul.f32 %v558, %v573
        %vm575 = vcmask 64512
        %v576 = vsel %vm575, %v574, -inf
        %577 = vmax.xlane.f32.xlu0 %v576
        %v578 = vpop.xlane.xlu0 %577
        %v579 = vsub.f32 %v574, %v578
        %v580 = vmul.f32 %v579, 1.442695
        %v581 = vpow.pop %v580
        %v582 = vsel %vm575, %v581, 0.0
        %583 = vadd.xlane.f32.xlu0 %v582
        %v584 = vpop.xlane.xlu0 %583
        %v585 = vrcp.pop %v584
        %v586 = vmul.f32 %v581, %v585
        %v587 = vmul.f32 %v586, %v573
        %v588 = vsel %vm575, %v587, 0.0
        %589 = vadd.xlane.f32.xlu0 %v588
        %v590 = vpop.xlane.xlu0 %589
        %v591 = vadd.f32 %v590, 1e-13
        %v592 = vrcp.pop %v591
        %v593 = vmul.f32 %v587, %v592
        %v594 = vld [vmem:[%s341] sm:$0xff]
        %v596 = vsel %vm575, %v593, 0
        %598 = vmatprep.subr.mxu0 0.0
        %599 = vmatpush1.msra.mxu0 0.0
        %600 = vmatprep.subr.mxu0 0.0
        %601 = vmatpush1.msra.mxu0 0.0
        %602 = vmatprep.subr.mxu0 0.0
        %603 = vmatpush1.msra.mxu0 0.0
        %604 = vmatprep.subr.mxu0 0.0
        %605 = vmatpush1.msra.mxu0 0.0
        %606 = vmatprep.subr.mxu0 0.0
        %607 = vmatpush1.msra.mxu0 0.0
        %608 = vmatprep.subr.mxu0 0.0
        %609 = vmatpush1.msra.mxu0 0.0
        %610 = vmatprep.subr.mxu0 0.0
        %611 = vmatpush1.msra.mxu0 0.0
        %612 = vmatprep.subr.mxu0 0.0
        %613 = vmatpush1.msra.mxu0 0.0
        %614 = vmatprep.subr.mxu0 0.0
        %615 = vmatpush1.msra.mxu0 0.0
        %616 = vmatprep.subr.mxu0 0.0
        %617 = vmatpush1.msra.mxu0 0.0
        %618 = vmatprep.subr.mxu0 0.0
        %619 = vmatpush1.msra.mxu0 0.0
        %620 = vmatprep.subr.mxu0 0.0
        %621 = vmatpush1.msra.mxu0 0.0
        %622 = vmatprep.subr.mxu0 0.0
        %623 = vmatpush1.msra.mxu0 0.0
        %624 = vmatprep.subr.mxu0 0.0
        %625 = vmatpush1.msra.mxu0 0.0
        %626 = vmatprep.subr.mxu0 0.0
        %627 = vmatpush1.msra.mxu0 0.0
        %628 = vmatprep.subr.mxu0 0.0
        %629 = vmatpush1.msra.mxu0 %v594
        %630 = vmatprep.subr.mxu0 0.0
        %631 = vmatpush2.msra.mxu0 0.0
        %632 = vmatprep.subr.mxu0 0.0
        %633 = vmatpush2.msra.mxu0 0.0
        %634 = vmatprep.subr.mxu0 0.0
        %635 = vmatpush2.msra.mxu0 0.0
        %636 = vmatprep.subr.mxu0 0.0
        %637 = vmatpush2.msra.mxu0 0.0
        %638 = vmatprep.subr.mxu0 0.0
        %639 = vmatpush2.msra.mxu0 0.0
        %640 = vmatprep.subr.mxu0 0.0
        %641 = vmatpush2.msra.mxu0 0.0
        %642 = vmatprep.subr.mxu0 0.0
        %643 = vmatpush2.msra.mxu0 0.0
        %644 = vmatprep.subr.mxu0 0.0
        %645 = vmatpush2.msra.mxu0 0.0
        %646 = vmatprep.subr.mxu0 0.0
        %647 = vmatpush2.msra.mxu0 0.0
        %648 = vmatprep.subr.mxu0 0.0
        %649 = vmatpush2.msra.mxu0 0.0
        %650 = vmatprep.subr.mxu0 0.0
        %651 = vmatpush2.msra.mxu0 0.0
        %652 = vmatprep.subr.mxu0 0.0
        %653 = vmatpush2.msra.mxu0 0.0
        %654 = vmatprep.subr.mxu0 0.0
        %655 = vmatpush2.msra.mxu0 0.0
        %656 = vmatprep.subr.mxu0 0.0
        %657 = vmatpush2.msra.mxu0 0.0
        %658 = vmatprep.subr.mxu0 0.0
        %659 = vmatpush2.msra.mxu0 0.0
        %660 = vmatprep.subr.mxu0 0.0
        %661 = vmatpush2.msra.mxu0 0.0
        %662 = vmatprep.mubr.f32.mxu0 0.0
        %663 = vmatmul.mubr.f32.gmra.mxu0 %v596
        %v664 = vpop.f32.mrf.mxu0
        %v665 = vadd.f32 0.0, %v664
        %v666 = vpop.f32.mrf.mxu0
        %667 = vdwg.mxu0
        %v668 = vld [vmem:[#allocation9] sm:$0xff]
        %v669 = vld [vmem:[#allocation9 + $0x8] sm:$0xff]
        %v670 = vld [vmem:[#allocation9 + $0x10] sm:$0xff]
        %v671 = vld [vmem:[#allocation9 + $0x18] sm:$0xff]
        %v672 = vld [vmem:[%s6] sm:$0x1]
        %v674 = vlaneseq
        %v675 = vshrl.u32 %v674, 7
        %v676 = vsub.s32 0, %v675
        %v677 = vrot.slane %v672, %v676
        %v680 = vsel %vm484, %v665, 0
        %682 = vmatprep.subr.mxu0 0.0
        %683 = vmatpush1.msra.mxu0 0.0
        %684 = vmatprep.subr.mxu0 0.0
        %685 = vmatpush1.msra.mxu0 0.0
        %686 = vmatprep.subr.mxu0 0.0
        %687 = vmatpush1.msra.mxu0 0.0
        %688 = vmatprep.subr.mxu0 0.0
        %689 = vmatpush1.msra.mxu0 0.0
        %690 = vmatprep.subr.mxu0 0.0
        %691 = vmatpush1.msra.mxu0 0.0
        %692 = vmatprep.subr.mxu0 0.0
        %693 = vmatpush1.msra.mxu0 0.0
        %694 = vmatprep.subr.mxu0 0.0
        %695 = vmatpush1.msra.mxu0 0.0
        %696 = vmatprep.subr.mxu0 0.0
        %697 = vmatpush1.msra.mxu0 0.0
        %698 = vmatprep.subr.mxu0 0.0
        %699 = vmatpush1.msra.mxu0 0.0
        %700 = vmatprep.subr.mxu0 0.0
        %701 = vmatpush1.msra.mxu0 0.0
        %702 = vmatprep.subr.mxu0 0.0
        %703 = vmatpush1.msra.mxu0 0.0
        %704 = vmatprep.subr.mxu0 0.0
        %705 = vmatpush1.msra.mxu0 0.0
        %706 = vmatprep.subr.mxu0 0.0
        %707 = vmatpush1.msra.mxu0 %v671
        %708 = vmatprep.subr.mxu0 0.0
        %709 = vmatpush1.msra.mxu0 %v670
        %710 = vmatprep.subr.mxu0 0.0
        %711 = vmatpush1.msra.mxu0 %v669
        %712 = vmatprep.subr.mxu0 0.0
        %713 = vmatpush1.msra.mxu0 %v668
        %714 = vmatprep.subr.mxu0 0.0
        %715 = vmatpush2.msra.mxu0 0.0
        %716 = vmatprep.subr.mxu0 0.0
        %717 = vmatpush2.msra.mxu0 0.0
        %718 = vmatprep.subr.mxu0 0.0
        %719 = vmatpush2.msra.mxu0 0.0
        %720 = vmatprep.subr.mxu0 0.0
        %721 = vmatpush2.msra.mxu0 0.0
        %722 = vmatprep.subr.mxu0 0.0
        %723 = vmatpush2.msra.mxu0 0.0
        %724 = vmatprep.subr.mxu0 0.0
        %725 = vmatpush2.msra.mxu0 0.0
        %726 = vmatprep.subr.mxu0 0.0
        %727 = vmatpush2.msra.mxu0 0.0
        %728 = vmatprep.subr.mxu0 0.0
        %729 = vmatpush2.msra.mxu0 0.0
        %730 = vmatprep.subr.mxu0 0.0
        %731 = vmatpush2.msra.mxu0 0.0
        %732 = vmatprep.subr.mxu0 0.0
        %733 = vmatpush2.msra.mxu0 0.0
        %734 = vmatprep.subr.mxu0 0.0
        %735 = vmatpush2.msra.mxu0 0.0
        %736 = vmatprep.subr.mxu0 0.0
        %737 = vmatpush2.msra.mxu0 0.0
        %738 = vmatprep.subr.mxu0 0.0
        %739 = vmatpush2.msra.mxu0 0.0
        %740 = vmatprep.subr.mxu0 0.0
        %741 = vmatpush2.msra.mxu0 0.0
        %742 = vmatprep.subr.mxu0 0.0
        %743 = vmatpush2.msra.mxu0 0.0
        %744 = vmatprep.subr.mxu0 0.0
        %745 = vmatpush2.msra.mxu0 0.0
        %746 = vmatprep.mubr.f32.mxu0 0.0
        %747 = vmatmul.mubr.f32.gmra.mxu0 %v680
        %v748 = vpop.f32.mrf.mxu0
        %v749 = vadd.f32 %v677, %v748
        %v750 = vpop.f32.mrf.mxu0
        %751 = vdwg.mxu0
        %v752 = vmax.f32 %v749, 0.0
        %753 = vst.msk [vmem:[%s387] sm:$0xff] %vm484, %v752
        %s754 = sand.u32 %s214, 1
        %s755 = scalar_lea.sflag [#allocation5], %s754
        %s756 = sand.u32 %s214, 1
        %s757 = smul.addr %s756, 8
        %s758 = scalar_lea.vmem [#allocation11], %s757
        // Predicated region
        $region69: #{tpu_custom_call.1} parent=47 // pred_check
          %p759 = pneg %p224
        $region70: #{tpu_custom_call.1} parent=47 // pred_check_branch
          %761 = sbr.rel (%p759) target = $region72
        $region71: #{tpu_custom_call.1} parent=47 // pred_region
          %s763 = ssub.s32 128, 128
          %764 = vsyncadd %s755, %s763
          %s765 = sadd.s32 %s33, %s32
          %s766 = smul.addr %s765, 128
          %s767 = scalar_lea.hbm %s7, %s766
          %s769 = sshll.u32 %s758, 4
          %s770 = int_to_ptr.vmem [resolvable:$true] %s769
          %772 = dma.vmem_to_hbm [thread:$0]  %s770, 128, %s767, %s755
        $region72: #{tpu_custom_call.1} parent=47 // pred_fallthru
          _
      $region48: #{tpu_custom_call.1} parent=5 // pred_fallthru
        _
      %p773 = scmp.le.s32.totalorder 2, %s23
      // Predicated region
      $region73: #{tpu_custom_call.1} parent=5 // pred_check
        %p774 = pneg %p773
      $region74: #{tpu_custom_call.1} parent=5 // pred_check_branch
        %776 = sbr.rel (%p774) target = $region76
      $region75: #{tpu_custom_call.1} parent=5 // pred_region
        %s777 = ssub.s32 %s23, 2
        // Predicated region
        $region77: #{tpu_custom_call.1} parent=75 // pred_check
          %p778 = pneg %p230
        $region78: #{tpu_custom_call.1} parent=75 // pred_check_branch
          %780 = sbr.rel (%p778) target = $region80
        $region79: #{tpu_custom_call.1} parent=75 // pred_region
          %s781 = sand.u32 %s215, 1
          %s782 = scalar_lea.sflag [#allocation5], %s781
          %s783 = sand.u32 %s215, 1
          %s784 = smul.addr %s783, 8
          %s785 = scalar_lea.vmem [#allocation11], %s784
          %786 = dma.done %s782, 128
        $region80: #{tpu_custom_call.1} parent=75 // pred_fallthru
          _
      $region76: #{tpu_custom_call.1} parent=5 // pred_fallthru
        _
    $region6: #{tpu_custom_call.1} parent=1 // loop_footer
      %s27 = sadd.s32 1, %s23
    $region7: #{tpu_custom_call.1} parent=1 // loop_footer_branch
      %22 = sbr.rel target = $region3
    $region8: #{tpu_custom_call.1} parent=1 // loop_exit
      _
    %787 = vsyncpa [#allocation4], 1
    %s788 = scalar_lea.sflag [#allocation4], 1
    %789 = vsyncpa %s788, 1
    %790 = vsyncpa [#allocation7], 1
    %s791 = scalar_lea.sflag [#allocation7], 1
    %792 = vsyncpa %s791, 1
    %793 = vsyncpa [#allocation10], 1
    %794 = vsyncpa [#allocation5], 1
    %s795 = scalar_lea.sflag [#allocation5], 1
    %796 = vsyncpa %s795, 1

// kernel: tpu_custom_call.1
$region0: #{tpu_custom_call.1}
  #allocation0 [shape = 'u32[]', space=smem, size = 0x4, offset = 0x4, fixed_abs, tag = 'smem constant byte address 0x4 - core index']
  #allocation1 [shape = 'u32[144,128]{1,0:T(1,128)}', space=vmem, size = 0x12000, scoped, tag = 'internal scratch']
  #allocation2 [shape = 'f32[8,32]{1,0:T(8,128)}', space=vmem, size = 0x1000, scoped, tag = 'scratch operand']
  %s0 = inlined_call_operand.hbm [shape: f32[2,8,32], index: 0, kind: input, shape index: {}]
  %s1 = inlined_call_operand.hbm [shape: f32[2,8,32], index: 1, kind: input, shape index: {}]
  %s2 = inlined_call_operand.vmem [shape: s32[2,1,1], index: 2, kind: input, shape index: {}]
  %s3 = inlined_call_operand.hbm [shape: f32[32,32], index: 3, kind: input, shape index: {}]
  %s4 = inlined_call_operand.vmem [shape: f32[1,32], index: 4, kind: input, shape index: {}]
  %s5 = inlined_call_operand.hbm [shape: f32[32,32], index: 5, kind: input, shape index: {}]
  %s6 = inlined_call_operand.vmem [shape: f32[1,32], index: 6, kind: input, shape index: {}]
  %s7 = inlined_call_operand.hbm [shape: f32[2,8,32], index: 7, kind: output, shape index: {}]
  %s8 = sld [smem:[#allocation0]]
  $region81: #{tpu_custom_call.1} parent=0
    _
  %s10 = ssub.s32 1, %s8
  %s11 = scalar_select 0, %s10, %s8
  $region1: #{tpu_custom_call.1} parent=0
    #allocation3 [shape = 'u8[8192]{0}', space=vmem, size = 0x2000, scoped, tag = 'input window, operand 0']
    #allocation4 [shape = 's32[2]{0}', space=sflag, size = 0x8, scoped, tag = 'scoped memory for tpu_custom_call.1']
    #allocation5 [shape = 's32[2]{0}', space=sflag, size = 0x8, scoped, tag = 'scoped memory for tpu_custom_call.1']
    #allocation6 [shape = 'u8[8192]{0}', space=vmem, size = 0x2000, scoped, tag = 'input window, operand 1']
    #allocation7 [shape = 's32[2]{0}', space=sflag, size = 0x8, scoped, tag = 'scoped memory for tpu_custom_call.1']
    #allocation8 [shape = 'u8[16384]{0}', space=vmem, size = 0x4000, scoped, tag = 'input window, operand 3, single buffered']
    #allocation9 [shape = 'u8[16384]{0}', space=vmem, size = 0x4000, scoped, tag = 'input window, operand 5, single buffered']
    #allocation10 [shape = 's32[1]{0}', space=sflag, size = 0x4, scoped, tag = 'scoped memory for tpu_custom_call.1']
    #allocation11 [shape = 'u8[8192]{0}', space=vmem, size = 0x2000, scoped, tag = 'output window, operand 0']
    %12 = vsyncpa [#allocation4], 0
    %s13 = scalar_lea.sflag [#allocation4], 1
    %14 = vsyncpa %s13, 0
    %15 = vsyncpa [#allocation7], 0
    %s16 = scalar_lea.sflag [#allocation7], 1
    %17 = vsyncpa %s16, 0
    %18 = vsyncpa [#allocation10], 0
    %19 = vsyncpa [#allocation5], 0
    %s20 = scalar_lea.sflag [#allocation5], 1
    %21 = vsyncpa %s20, 0
    loop: start=0, step=1, limit=4
    $region2: #{tpu_custom_call.1} parent=1 // loop_pre_header
      _
    $region3: #{tpu_custom_call.1} parent=1 // loop_header
      %s23 = sphi 0, %s27
      %p24 = scmp.ge.s32.totalorder %s23, 4
      %s30 = sphi 0, %s42
      %s31 = sphi 0, %s38
      %s32 = sphi 0, %s30
      %s33 = sphi 0, %s31
      %s34 = sphi 0, %s32
      %s35 = sphi 0, %s33
      %s47 = sphi 0, %s49
      %s50 = sphi 0, %s47
      %s51 = sphi 0, %s50
      %s67 = sphi 0, %s51
      %s73 = sphi 0, %s75
      %s76 = sphi 0, %s73
      %s77 = sphi 0, %s76
      %s93 = sphi 0, %s77
      %s99 = sphi 0, %s101
      %s102 = sphi 0, %s99
      %s103 = sphi 0, %s102
      %s119 = sphi 0, %s103
      %s123 = sphi 0, %s123
      %s125 = sphi 0, %s123
      %s126 = sphi 0, %s125
      %s140 = sphi 0, %s126
      %s144 = sphi 0, %s144
      %s146 = sphi 0, %s144
      %s147 = sphi 0, %s146
      %s161 = sphi 0, %s147
      %s165 = sphi 0, %s165
      %s167 = sphi 0, %s165
      %s168 = sphi 0, %s167
      %s182 = sphi 0, %s168
      %s186 = sphi 0, %s186
      %s188 = sphi 0, %s186
      %s189 = sphi 0, %s188
      %s203 = sphi 0, %s189
      %s211 = sphi 0, %s213
      %s214 = sphi 0, %s211
      %s215 = sphi 0, %s214
      %s231 = sphi 0, %s215
    $region4: #{tpu_custom_call.1} parent=1 // loop_header_branch
      %26 = sbr.rel (%p24) target = $region8
    $region5: #{tpu_custom_call.1} parent=1 // loop_body
      %s28 = ssub.s32 %s23, 1
      %s29 = ssub.s32 %s23, 2
      %s36 = sadd.s32 1, %s31
      %p37 = scmp.ge.s32.totalorder %s36, 1
      %s38 = scalar_select %p37, 0, %s36
      %s39 = sadd.s32 1, %s30
      %s40 = scalar_select %p37, %s39, %s30
      %p41 = scmp.ge.s32.totalorder %s40, 2
      %s42 = scalar_select %p41, 0, %s40
      %s43 = ssub.s32 %s30, %s42
      %s44 = ssub.s32 %s31, %s38
      %s45 = sor.u32 %s43, %s44
      %p46 = scmp.eq.s32.totalorder %s45, 0
      %s48 = sadd.s32 %s47, 1
      %s49 = scalar_select %p46, %s47, %s48
      %p52 = pneg %p46
      %p53 = scmp.eq.s32.totalorder %s23, 1
      %p54 = por %p52, %p53
      %p55 = scmp.ne.s32.totalorder %s47, %s50
      %p56 = scmp.eq.s32.totalorder %s23, 0
      %p57 = por %p55, %p56
      %p58 = scmp.ne.s32.totalorder %s47, %s50
      %p59 = scmp.eq.s32.totalorder %s28, 1
      %p60 = por %p58, %p59
      %p61 = scmp.ne.s32.totalorder %s50, %s51
      %p62 = scmp.eq.s32.totalorder %s28, 0
      %p63 = por %p61, %p62
      %p64 = scmp.ne.s32.totalorder %s50, %s51
      %p65 = scmp.eq.s32.totalorder %s29, 1
      %p66 = por %p64, %p65
      %p68 = scmp.ne.s32.totalorder %s51, %s67
      %p69 = scmp.eq.s32.totalorder %s29, 0
      %p70 = por %p68, %p69
      %s71 = ssub.s32 %s30, %s42
      %p72 = scmp.eq.s32.totalorder %s71, 0
      %s74 = sadd.s32 %s73, 1
      %s75 = scalar_select %p72, %s73, %s74
      %p78 = pneg %p72
      %p79 = scmp.eq.s32.totalorder %s23, 1
      %p80 = por %p78, %p79
      %p81 = scmp.ne.s32.totalorder %s73, %s76
      %p82 = scmp.eq.s32.totalorder %s23, 0
      %p83 = por %p81, %p82
      %p84 = scmp.ne.s32.totalorder %s73, %s76
      %p85 = scmp.eq.s32.totalorder %s28, 1
      %p86 = por %p84, %p85
      %p87 = scmp.ne.s32.totalorder %s76, %s77
      %p88 = scmp.eq.s32.totalorder %s28, 0
      %p89 = por %p87, %p88
      %p90 = scmp.ne.s32.totalorder %s76, %s77
      %p91 = scmp.eq.s32.totalorder %s29, 1
      %p92 = por %p90, %p91
      %p94 = scmp.ne.s32.totalorder %s77, %s93
      %p95 = scmp.eq.s32.totalorder %s29, 0
      %p96 = por %p94, %p95
      %s97 = ssub.s32 %s30, %s42
      %p98 = scmp.eq.s32.totalorder %s97, 0
      %s100 = sadd.s32 %s99, 1
      %s101 = scalar_select %p98, %s99, %s100
      %p104 = pneg %p98
      %p105 = scmp.eq.s32.totalorder %s23, 1
      %p106 = por %p104, %p105
      %p107 = scmp.ne.s32.totalorder %s99, %s102
      %p108 = scmp.eq.s32.totalorder %s23, 0
      %p109 = por %p107, %p108
      %p110 = scmp.ne.s32.totalorder %s99, %s102
      %p111 = scmp.eq.s32.totalorder %s28, 1
      %p112 = por %p110, %p111
      %p113 = scmp.ne.s32.totalorder %s102, %s103
      %p114 = scmp.eq.s32.totalorder %s28, 0
      %p115 = por %p113, %p114
      %p116 = scmp.ne.s32.totalorder %s102, %s103
      %p117 = scmp.eq.s32.totalorder %s29, 1
      %p118 = por %p116, %p117
      %p120 = scmp.ne.s32.totalorder %s103, %s119
      %p121 = scmp.eq.s32.totalorder %s29, 0
      %p122 = por %p120, %p121
      %s124 = sadd.s32 %s123, 1
      %p127 = scmp.eq.s32.totalorder %s23, 1
      %p128 = scmp.ne.s32.totalorder %s123, %s125
      %p129 = scmp.eq.s32.totalorder %s23, 0
      %p130 = por %p128, %p129
      %p131 = scmp.ne.s32.totalorder %s123, %s125
      %p132 = scmp.eq.s32.totalorder %s28, 1
      %p133 = por %p131, %p132
      %p134 = scmp.ne.s32.totalorder %s125, %s126
      %p135 = scmp.eq.s32.totalorder %s28, 0
      %p136 = por %p134, %p135
      %p137 = scmp.ne.s32.totalorder %s125, %s126
      %p138 = scmp.eq.s32.totalorder %s29, 1
      %p139 = por %p137, %p138
      %p141 = scmp.ne.s32.totalorder %s126, %s140
      %p142 = scmp.eq.s32.totalorder %s29, 0
      %p143 = por %p141, %p142
      %s145 = sadd.s32 %s144, 1
      %p148 = scmp.eq.s32.totalorder %s23, 1
      %p149 = scmp.ne.s32.totalorder %s144, %s146
      %p150 = scmp.eq.s32.totalorder %s23, 0
      %p151 = por %p149, %p150
      %p152 = scmp.ne.s32.totalorder %s144, %s146
      %p153 = scmp.eq.s32.totalorder %s28, 1
      %p154 = por %p152, %p153
      %p155 = scmp.ne.s32.totalorder %s146, %s147
      %p156 = scmp.eq.s32.totalorder %s28, 0
      %p157 = por %p155, %p156
      %p158 = scmp.ne.s32.totalorder %s146, %s147
      %p159 = scmp.eq.s32.totalorder %s29, 1
      %p160 = por %p158, %p159
      %p162 = scmp.ne.s32.totalorder %s147, %s161
      %p163 = scmp.eq.s32.totalorder %s29, 0
      %p164 = por %p162, %p163
      %s166 = sadd.s32 %s165, 1
      %p169 = scmp.eq.s32.totalorder %s23, 1
      %p170 = scmp.ne.s32.totalorder %s165, %s167
      %p171 = scmp.eq.s32.totalorder %s23, 0
      %p172 = por %p170, %p171
      %p173 = scmp.ne.s32.totalorder %s165, %s167
      %p174 = scmp.eq.s32.totalorder %s28, 1
      %p175 = por %p173, %p174
      %p176 = scmp.ne.s32.totalorder %s167, %s168
      %p177 = scmp.eq.s32.totalorder %s28, 0
      %p178 = por %p176, %p177
      %p179 = scmp.ne.s32.totalorder %s167, %s168
      %p180 = scmp.eq.s32.totalorder %s29, 1
      %p181 = por %p179, %p180
      %p183 = scmp.ne.s32.totalorder %s168, %s182
      %p184 = scmp.eq.s32.totalorder %s29, 0
      %p185 = por %p183, %p184
      %s187 = sadd.s32 %s186, 1
      %p190 = scmp.eq.s32.totalorder %s23, 1
      %p191 = scmp.ne.s32.totalorder %s186, %s188
      %p192 = scmp.eq.s32.totalorder %s23, 0
      %p193 = por %p191, %p192
      %p194 = scmp.ne.s32.totalorder %s186, %s188
      %p195 = scmp.eq.s32.totalorder %s28, 1
      %p196 = por %p194, %p195
      %p197 = scmp.ne.s32.totalorder %s188, %s189
      %p198 = scmp.eq.s32.totalorder %s28, 0
      %p199 = por %p197, %p198
      %p200 = scmp.ne.s32.totalorder %s188, %s189
      %p201 = scmp.eq.s32.totalorder %s29, 1
      %p202 = por %p200, %p201
      %p204 = scmp.ne.s32.totalorder %s189, %s203
      %p205 = scmp.eq.s32.totalorder %s29, 0
      %p206 = por %p204, %p205
      %s207 = ssub.s32 %s30, %s42
      %s208 = ssub.s32 %s31, %s38
      %s209 = sor.u32 %s207, %s208
      %p210 = scmp.eq.s32.totalorder %s209, 0
      %s212 = sadd.s32 %s211, 1
      %s213 = scalar_select %p210, %s211, %s212
      %p216 = pneg %p210
      %p217 = scmp.eq.s32.totalorder %s23, 1
      %p218 = por %p216, %p217
      %p219 = scmp.ne.s32.totalorder %s211, %s214
      %p220 = scmp.eq.s32.totalorder %s23, 0
      %p221 = por %p219, %p220
      %p222 = scmp.ne.s32.totalorder %s211, %s214
      %p223 = scmp.eq.s32.totalorder %s28, 1
      %p224 = por %p222, %p223
      %p225 = scmp.ne.s32.totalorder %s214, %s215
      %p226 = scmp.eq.s32.totalorder %s28, 0
      %p227 = por %p225, %p226
      %p228 = scmp.ne.s32.totalorder %s214, %s215
      %p229 = scmp.eq.s32.totalorder %s29, 1
      %p230 = por %p228, %p229
      %p232 = scmp.ne.s32.totalorder %s215, %s231
      %p233 = scmp.eq.s32.totalorder %s29, 0
      %p234 = por %p232, %p233
      %p235 = scmp.le.s32.totalorder 1, %s23
      %p236 = scmp.lt.s32.totalorder %s23, 3
      %p237 = pnand %p235, %p236
      %p238 = pneg %p237
      // Predicated region
      $region9: #{tpu_custom_call.1} parent=5 // pred_check
        _
      $region10: #{tpu_custom_call.1} parent=5 // pred_check_branch
        %240 = sbr.rel (%p237) target = $region12
      $region11: #{tpu_custom_call.1} parent=5 // pred_region
        %s241 = ssub.s32 %s23, 1
        // Predicated region
        $region13: #{tpu_custom_call.1} parent=11 // pred_check
          %p242 = pneg %p136
        $region14: #{tpu_custom_call.1} parent=11 // pred_check_branch
          %244 = sbr.rel (%p242) target = $region16
        $region15: #{tpu_custom_call.1} parent=11 // pred_region
          %s246 = ssub.s32 512, 512
          %247 = vsyncadd [#allocation7], %s246
          %s248 = sshll.u32 [#allocation8], 4
          %s249 = int_to_ptr.vmem [resolvable:$true] %s248
          %254 = dma.hbm_to_vmem [thread:$0]  %s3, 512, %s249, [#allocation7], 128, 128, 8
        $region16: #{tpu_custom_call.1} parent=11 // pred_fallthru
          _
        // Predicated region
        $region17: #{tpu_custom_call.1} parent=11 // pred_check
          %p255 = pneg %p157
        $region18: #{tpu_custom_call.1} parent=11 // pred_check_branch
          %257 = sbr.rel (%p255) target = $region20
        $region19: #{tpu_custom_call.1} parent=11 // pred_region
          _
        $region20: #{tpu_custom_call.1} parent=11 // pred_fallthru
          _
        // Predicated region
        $region21: #{tpu_custom_call.1} parent=11 // pred_check
          %p258 = pneg %p178
        $region22: #{tpu_custom_call.1} parent=11 // pred_check_branch
          %260 = sbr.rel (%p258) target = $region24
        $region23: #{tpu_custom_call.1} parent=11 // pred_region
          %s262 = ssub.s32 512, 512
          %263 = vsyncadd [#allocation10], %s262
          %s264 = sshll.u32 [#allocation9], 4
          %s265 = int_to_ptr.vmem [resolvable:$true] %s264
          %270 = dma.hbm_to_vmem [thread:$0]  %s5, 512, %s265, [#allocation10], 128, 128, 8
        $region24: #{tpu_custom_call.1} parent=11 // pred_fallthru
          _
        // Predicated region
        $region25: #{tpu_custom_call.1} parent=11 // pred_check
          %p271 = pneg %p199
        $region26: #{tpu_custom_call.1} parent=11 // pred_check_branch
          %273 = sbr.rel (%p271) target = $region28
        $region27: #{tpu_custom_call.1} parent=11 // pred_region
          _
        $region28: #{tpu_custom_call.1} parent=11 // pred_fallthru
          _
      $region12: #{tpu_custom_call.1} parent=5 // pred_fallthru
        _
      %p274 = scmp.lt.s32.totalorder %s23, 2
      // Predicated region
      $region29: #{tpu_custom_call.1} parent=5 // pred_check
        %p275 = pneg %p274
      $region30: #{tpu_custom_call.1} parent=5 // pred_check_branch
        %277 = sbr.rel (%p275) target = $region32
      $region31: #{tpu_custom_call.1} parent=5 // pred_region
        // Predicated region
        $region33: #{tpu_custom_call.1} parent=31 // pred_check
          %p278 = pneg %p57
        $region34: #{tpu_custom_call.1} parent=31 // pred_check_branch
          %280 = sbr.rel (%p278) target = $region36
        $region35: #{tpu_custom_call.1} parent=31 // pred_region
          %s281 = sand.u32 %s47, 1
          %s282 = scalar_lea.sflag [#allocation4], %s281
          %s283 = sand.u32 %s47, 1
          %s284 = smul.addr %s283, 8
          %s285 = scalar_lea.vmem [#allocation3], %s284
          %s287 = ssub.s32 128, 128
          %288 = vsyncadd %s282, %s287
          %s289 = sadd.s32 %s31, %s30
          %s290 = smul.addr %s289, 128
          %s291 = scalar_lea.hbm %s0, %s290
          %s293 = sshll.u32 %s285, 4
          %s294 = int_to_ptr.vmem [resolvable:$true] %s293
          %296 = dma.hbm_to_vmem [thread:$0]  %s291, 128, %s294, %s282
        $region36: #{tpu_custom_call.1} parent=31 // pred_fallthru
          _
        // Predicated region
        $region37: #{tpu_custom_call.1} parent=31 // pred_check
          %p297 = pneg %p83
        $region38: #{tpu_custom_call.1} parent=31 // pred_check_branch
          %299 = sbr.rel (%p297) target = $region40
        $region39: #{tpu_custom_call.1} parent=31 // pred_region
          %s300 = sand.u32 %s23, 1
          %s301 = scalar_lea.sflag [#allocation7], %s300
          %s302 = sand.u32 %s73, 1
          %s303 = smul.addr %s302, 8
          %s304 = scalar_lea.vmem [#allocation6], %s303
          %s306 = ssub.s32 128, 128
          %307 = vsyncadd %s301, %s306
          %s308 = smul.addr %s30, 128
          %s309 = scalar_lea.hbm %s1, %s308
          %s311 = sshll.u32 %s304, 4
          %s312 = int_to_ptr.vmem [resolvable:$true] %s311
          %314 = dma.hbm_to_vmem [thread:$0]  %s309, 128, %s312, %s301
        $region40: #{tpu_custom_call.1} parent=31 // pred_fallthru
          _
        // Predicated region
        $region41: #{tpu_custom_call.1} parent=31 // pred_check
          %p315 = pneg %p109
        $region42: #{tpu_custom_call.1} parent=31 // pred_check_branch
          %317 = sbr.rel (%p315) target = $region44
        $region43: #{tpu_custom_call.1} parent=31 // pred_region
          %p318 = scmp.lt.s32.totalorder %s30, 1
          %s319 = scalar_select %p318, %s30, 1
          %s320 = scalar_lea.vmem %s2, %s319
        $region44: #{tpu_custom_call.1} parent=31 // pred_fallthru
          _
      $region32: #{tpu_custom_call.1} parent=5 // pred_fallthru
        _
      %p321 = scmp.le.s32.totalorder 1, %s23
      %p322 = scmp.lt.s32.totalorder %s23, 3
      %p323 = pnand %p321, %p322
      %p324 = pneg %p323
      // Predicated region
      $region45: #{tpu_custom_call.1} parent=5 // pred_check
        _
      $region46: #{tpu_custom_call.1} parent=5 // pred_check_branch
        %326 = sbr.rel (%p323) target = $region48
      $region47: #{tpu_custom_call.1} parent=5 // pred_region
        %s327 = ssub.s32 %s23, 1
        %s328 = sand.u32 %s50, 1
        %s329 = scalar_lea.sflag [#allocation4], %s328
        %s330 = sand.u32 %s50, 1
        %s331 = smul.addr %s330, 8
        %s332 = scalar_lea.vmem [#allocation3], %s331
        // Predicated region
        $region49: #{tpu_custom_call.1} parent=47 // pred_check
          %p333 = pneg %p63
        $region50: #{tpu_custom_call.1} parent=47 // pred_check_branch
          %335 = sbr.rel (%p333) target = $region52
        $region51: #{tpu_custom_call.1} parent=47 // pred_region
          %336 = dma.done %s329, 128
        $region52: #{tpu_custom_call.1} parent=47 // pred_fallthru
          _
        %s337 = sand.u32 %s28, 1
        %s338 = scalar_lea.sflag [#allocation7], %s337
        %s339 = sand.u32 %s76, 1
        %s340 = smul.addr %s339, 8
        %s341 = scalar_lea.vmem [#allocation6], %s340
        // Predicated region
        $region53: #{tpu_custom_call.1} parent=47 // pred_check
          %p342 = pneg %p89
        $region54: #{tpu_custom_call.1} parent=47 // pred_check_branch
          %344 = sbr.rel (%p342) target = $region56
        $region55: #{tpu_custom_call.1} parent=47 // pred_region
          %345 = dma.done %s338, 128
        $region56: #{tpu_custom_call.1} parent=47 // pred_fallthru
          _
        // Predicated region
        $region57: #{tpu_custom_call.1} parent=47 // pred_check
          %p346 = pneg %p136
        $region58: #{tpu_custom_call.1} parent=47 // pred_check_branch
          %348 = sbr.rel (%p346) target = $region60
        $region59: #{tpu_custom_call.1} parent=47 // pred_region
          %349 = dma.done [#allocation7], 512
        $region60: #{tpu_custom_call.1} parent=47 // pred_fallthru
          _
        // Predicated region
        $region61: #{tpu_custom_call.1} parent=47 // pred_check
          %p350 = pneg %p178
        $region62: #{tpu_custom_call.1} parent=47 // pred_check_branch
          %352 = sbr.rel (%p350) target = $region64
        $region63: #{tpu_custom_call.1} parent=47 // pred_region
          %353 = dma.done [#allocation10], 512
        $region64: #{tpu_custom_call.1} parent=47 // pred_fallthru
          _
        %s354 = sand.u32 %s50, 1
        %s355 = scalar_lea.sflag [#allocation4], %s354
        %s356 = sand.u32 %s50, 1
        %s357 = smul.addr %s356, 8
        %s358 = scalar_lea.vmem [#allocation3], %s357
        %p359 = pneg %p63
        %p360 = pneg %p60
        %s361 = sand.u32 %s28, 1
        %s362 = scalar_lea.sflag [#allocation7], %s361
        %s363 = sand.u32 %s76, 1
        %s364 = smul.addr %s363, 8
        %s365 = scalar_lea.vmem [#allocation6], %s364
        %p366 = pneg %p89
        %p367 = pneg %p86
        %p368 = scmp.lt.s32.totalorder %s32, 1
        %s369 = scalar_select %p368, %s32, 1
        %s370 = scalar_lea.vmem %s2, %s369
        %p371 = pneg %p115
        %p372 = pneg %p112
        %p373 = pneg %p136
        %p374 = pneg %p133
        %p375 = pneg %p157
        %p376 = pneg %p154
        %p377 = pneg %p178
        %p378 = pneg %p175
        %p379 = pneg %p199
        %p380 = pneg %p196
        %p381 = pneg %p227
        %p382 = pneg %p224
        %s383 = sand.u32 %s214, 1
        %s384 = scalar_lea.sflag [#allocation5], %s383
        %s385 = sand.u32 %s214, 1
        %s386 = smul.addr %s385, 8
        %s387 = scalar_lea.vmem [#allocation11], %s386
        %p388 = scmp.lt.s32.totalorder %s32, 1
        %s389 = scalar_select %p388, %s32, 1
        %s390 = scalar_lea.vmem %s2, %s389
        %p391 = scmp.eq.s32.totalorder %s33, 0
        // Predicated region
        $region65: #{tpu_custom_call.1} parent=47 // pred_check
          %p392 = pneg %p391
        $region66: #{tpu_custom_call.1} parent=47 // pred_check_branch
          %394 = sbr.rel (%p392) target = $region68
        $region67: #{tpu_custom_call.1} parent=47 // pred_region
          %v395 = vld [vmem:[%s341] sm:$0xff]
          %v396 = vld [vmem:[#allocation8] sm:$0xff]
          %v397 = vld [vmem:[#allocation8 + $0x8] sm:$0xff]
          %v398 = vld [vmem:[#allocation8 + $0x10] sm:$0xff]
          %v399 = vld [vmem:[#allocation8 + $0x18] sm:$0xff]
          %v400 = vld [vmem:[%s4] sm:$0x1]
          %v402 = vlaneseq
          %v403 = vshrl.u32 %v402, 7
          %v404 = vsub.s32 0, %v403
          %v405 = vrot.slane %v400, %v404
          %vm407 = vcmask 261120
          %v409 = vsel %vm407, %v395, 0
          %411 = vmatprep.subr.mxu0 0.0
          %412 = vmatpush1.msra.mxu0 0.0
          %413 = vmatprep.subr.mxu0 0.0
          %414 = vmatpush1.msra.mxu0 0.0
          %415 = vmatprep.subr.mxu0 0.0
          %416 = vmatpush1.msra.mxu0 0.0
          %417 = vmatprep.subr.mxu0 0.0
          %418 = vmatpush1.msra.mxu0 0.0
          %419 = vmatprep.subr.mxu0 0.0
          %420 = vmatpush1.msra.mxu0 0.0
          %421 = vmatprep.subr.mxu0 0.0
          %422 = vmatpush1.msra.mxu0 0.0
          %423 = vmatprep.subr.mxu0 0.0
          %424 = vmatpush1.msra.mxu0 0.0
          %425 = vmatprep.subr.mxu0 0.0
          %426 = vmatpush1.msra.mxu0 0.0
          %427 = vmatprep.subr.mxu0 0.0
          %428 = vmatpush1.msra.mxu0 0.0
          %429 = vmatprep.subr.mxu0 0.0
          %430 = vmatpush1.msra.mxu0 0.0
          %431 = vmatprep.subr.mxu0 0.0
          %432 = vmatpush1.msra.mxu0 0.0
          %433 = vmatprep.subr.mxu0 0.0
          %434 = vmatpush1.msra.mxu0 0.0
          %435 = vmatprep.subr.mxu0 0.0
          %436 = vmatpush1.msra.mxu0 %v399
          %437 = vmatprep.subr.mxu0 0.0
          %438 = vmatpush1.msra.mxu0 %v398
          %439 = vmatprep.subr.mxu0 0.0
          %440 = vmatpush1.msra.mxu0 %v397
          %441 = vmatprep.subr.mxu0 0.0
          %442 = vmatpush1.msra.mxu0 %v396
          %443 = vmatprep.subr.mxu0 0.0
          %444 = vmatpush2.msra.mxu0 0.0
          %445 = vmatprep.subr.mxu0 0.0
          %446 = vmatpush2.msra.mxu0 0.0
          %447 = vmatprep.subr.mxu0 0.0
          %448 = vmatpush2.msra.mxu0 0.0
          %449 = vmatprep.subr.mxu0 0.0
          %450 = vmatpush2.msra.mxu0 0.0
          %451 = vmatprep.subr.mxu0 0.0
          %452 = vmatpush2.msra.mxu0 0.0
          %453 = vmatprep.subr.mxu0 0.0
          %454 = vmatpush2.msra.mxu0 0.0
          %455 = vmatprep.subr.mxu0 0.0
          %456 = vmatpush2.msra.mxu0 0.0
          %457 = vmatprep.subr.mxu0 0.0
          %458 = vmatpush2.msra.mxu0 0.0
          %459 = vmatprep.subr.mxu0 0.0
          %460 = vmatpush2.msra.mxu0 0.0
          %461 = vmatprep.subr.mxu0 0.0
          %462 = vmatpush2.msra.mxu0 0.0
          %463 = vmatprep.subr.mxu0 0.0
          %464 = vmatpush2.msra.mxu0 0.0
          %465 = vmatprep.subr.mxu0 0.0
          %466 = vmatpush2.msra.mxu0 0.0
          %467 = vmatprep.subr.mxu0 0.0
          %468 = vmatpush2.msra.mxu0 0.0
          %469 = vmatprep.subr.mxu0 0.0
          %470 = vmatpush2.msra.mxu0 0.0
          %471 = vmatprep.subr.mxu0 0.0
          %472 = vmatpush2.msra.mxu0 0.0
          %473 = vmatprep.subr.mxu0 0.0
          %474 = vmatpush2.msra.mxu0 0.0
          %475 = vmatprep.mubr.f32.mxu0 0.0
          %476 = vmatmul.mubr.f32.gmra.mxu0 %v409
          %v477 = vpop.f32.mrf.mxu0
          %v478 = vadd.f32 %v405, %v477
          %v479 = vpop.f32.mrf.mxu0
          %480 = vdwg.mxu0
          %481 = vst.msk [vmem:[#allocation2] sm:$0xff] %vm407, %v478
        $region68: #{tpu_custom_call.1} parent=47 // pred_fallthru
          _
        %v482 = vld [vmem:[%s332] sm:$0xff]
        %v483 = vld [vmem:[#allocation2] sm:$0xff]
        %vm484 = vcmask 261120
        %v486 = vsel %vm484, %v482, 0
        %v489 = vsel %vm484, %v483, 0
        %491 = vmatprep.subr.mxu0 0.0
        %492 = vmatpush1.xpose.msra.mxu0 0.0
        %493 = vmatprep.subr.mxu0 0.0
        %494 = vmatpush1.xpose.msra.mxu0 0.0
        %495 = vmatprep.subr.mxu0 0.0
        %496 = vmatpush1.xpose.msra.mxu0 0.0
        %497 = vmatprep.subr.mxu0 0.0
        %498 = vmatpush1.xpose.msra.mxu0 0.0
        %499 = vmatprep.subr.mxu0 0.0
        %500 = vmatpush1.xpose.msra.mxu0 0.0
        %501 = vmatprep.subr.mxu0 0.0
        %502 = vmatpush1.xpose.msra.mxu0 0.0
        %503 = vmatprep.subr.mxu0 0.0
        %504 = vmatpush1.xpose.msra.mxu0 0.0
        %505 = vmatprep.subr.mxu0 0.0
        %506 = vmatpush1.xpose.msra.mxu0 0.0
        %507 = vmatprep.subr.mxu0 0.0
        %508 = vmatpush1.xpose.msra.mxu0 0.0
        %509 = vmatprep.subr.mxu0 0.0
        %510 = vmatpush1.xpose.msra.mxu0 0.0
        %511 = vmatprep.subr.mxu0 0.0
        %512 = vmatpush1.xpose.msra.mxu0 0.0
        %513 = vmatprep.subr.mxu0 0.0
        %514 = vmatpush1.xpose.msra.mxu0 0.0
        %515 = vmatprep.subr.mxu0 0.0
        %516 = vmatpush1.xpose.msra.mxu0 0.0
        %517 = vmatprep.subr.mxu0 0.0
        %518 = vmatpush1.xpose.msra.mxu0 0.0
        %519 = vmatprep.subr.mxu0 0.0
        %520 = vmatpush1.xpose.msra.mxu0 0.0
        %521 = vmatprep.subr.mxu0 0.0
        %522 = vmatpush1.xpose.msra.mxu0 %v489
        %523 = vmatprep.subr.mxu0 0.0
        %524 = vmatpush2.xpose.msra.mxu0 0.0
        %525 = vmatprep.subr.mxu0 0.0
        %526 = vmatpush2.xpose.msra.mxu0 0.0
        %527 = vmatprep.subr.mxu0 0.0
        %528 = vmatpush2.xpose.msra.mxu0 0.0
        %529 = vmatprep.subr.mxu0 0.0
        %530 = vmatpush2.xpose.msra.mxu0 0.0
        %531 = vmatprep.subr.mxu0 0.0
        %532 = vmatpush2.xpose.msra.mxu0 0.0
        %533 = vmatprep.subr.mxu0 0.0
        %534 = vmatpush2.xpose.msra.mxu0 0.0
        %535 = vmatprep.subr.mxu0 0.0
        %536 = vmatpush2.xpose.msra.mxu0 0.0
        %537 = vmatprep.subr.mxu0 0.0
        %538 = vmatpush2.xpose.msra.mxu0 0.0
        %539 = vmatprep.subr.mxu0 0.0
        %540 = vmatpush2.xpose.msra.mxu0 0.0
        %541 = vmatprep.subr.mxu0 0.0
        %542 = vmatpush2.xpose.msra.mxu0 0.0
        %543 = vmatprep.subr.mxu0 0.0
        %544 = vmatpush2.xpose.msra.mxu0 0.0
        %545 = vmatprep.subr.mxu0 0.0
        %546 = vmatpush2.xpose.msra.mxu0 0.0
        %547 = vmatprep.subr.mxu0 0.0
        %548 = vmatpush2.xpose.msra.mxu0 0.0
        %549 = vmatprep.subr.mxu0 0.0
        %550 = vmatpush2.xpose.msra.mxu0 0.0
        %551 = vmatprep.subr.mxu0 0.0
        %552 = vmatpush2.xpose.msra.mxu0 0.0
        %553 = vmatprep.subr.mxu0 0.0
        %554 = vmatpush2.xpose.msra.mxu0 0.0
        %555 = vmatprep.mubr.f32.mxu0 0.0
        %556 = vmatmul.mubr.f32.gmra.mxu0 %v486
        %v557 = vpop.f32.mrf.mxu0
        %v558 = vadd.f32 0.0, %v557
        %v559 = vpop.f32.mrf.mxu0
        %560 = vdwg.mxu0
        %v561 = vlaneseq
        %v562 = vand.u32 %v561, 127
        %v563 = vld [vmem:[%s390] sm:$0x1]
        %564 = vset.pattern.permute.xlu0 0
        %565 = vperm.xlu0 %564, %v563
        %v566 = vpop.permute.xlu0 %565
        %v567 = vlaneseq
        %v568 = vshrl.u32 %v567, 7
        %v569 = vsub.s32 0, %v568
        %v570 = vrot.slane %v566, %v569
        %vm571 = vcmp.lt.s32.totalorder %v562, %v570
        %v572 = vsel %vm571, 1, 0
        %v573 = vcvt.s32.f32 %v572
        %v574 = vmul.f32 %v558, %v573
        %vm575 = vcmask 64512
        %v576 = vsel %vm575, %v574, -inf
        %577 = vmax.xlane.f32.xlu0 %v576
        %v578 = vpop.xlane.xlu0 %577
        %v579 = vsub.f32 %v574, %v578
        %v580 = vmul.f32 %v579, 1.442695
        %v581 = vpow.pop %v580
        %v582 = vsel %vm575, %v581, 0.0
        %583 = vadd.xlane.f32.xlu0 %v582
        %v584 = vpop.xlane.xlu0 %583
        %v585 = vrcp.pop %v584
        %v586 = vmul.f32 %v581, %v585
        %v587 = vmul.f32 %v586, %v573
        %v588 = vsel %vm575, %v587, 0.0
        %589 = vadd.xlane.f32.xlu0 %v588
        %v590 = vpop.xlane.xlu0 %589
        %v591 = vadd.f32 %v590, 1e-13
        %v592 = vrcp.pop %v591
        %v593 = vmul.f32 %v587, %v592
        %v594 = vld [vmem:[%s341] sm:$0xff]
        %v596 = vsel %vm575, %v593, 0
        %598 = vmatprep.subr.mxu0 0.0
        %599 = vmatpush1.msra.mxu0 0.0
        %600 = vmatprep.subr.mxu0 0.0
        %601 = vmatpush1.msra.mxu0 0.0
        %602 = vmatprep.subr.mxu0 0.0
        %603 = vmatpush1.msra.mxu0 0.0
        %604 = vmatprep.subr.mxu0 0.0
        %605 = vmatpush1.msra.mxu0 0.0
        %606 = vmatprep.subr.mxu0 0.0
        %607 = vmatpush1.msra.mxu0 0.0
        %608 = vmatprep.subr.mxu0 0.0
        %609 = vmatpush1.msra.mxu0 0.0
        %610 = vmatprep.subr.mxu0 0.0
        %611 = vmatpush1.msra.mxu0 0.0
        %612 = vmatprep.subr.mxu0 0.0
        %613 = vmatpush1.msra.mxu0 0.0
        %614 = vmatprep.subr.mxu0 0.0
        %615 = vmatpush1.msra.mxu0 0.0
        %616 = vmatprep.subr.mxu0 0.0
        %617 = vmatpush1.msra.mxu0 0.0
        %618 = vmatprep.subr.mxu0 0.0
        %619 = vmatpush1.msra.mxu0 0.0
        %620 = vmatprep.subr.mxu0 0.0
        %621 = vmatpush1.msra.mxu0 0.0
        %622 = vmatprep.subr.mxu0 0.0
        %623 = vmatpush1.msra.mxu0 0.0
        %624 = vmatprep.subr.mxu0 0.0
        %625 = vmatpush1.msra.mxu0 0.0
        %626 = vmatprep.subr.mxu0 0.0
        %627 = vmatpush1.msra.mxu0 0.0
        %628 = vmatprep.subr.mxu0 0.0
        %629 = vmatpush1.msra.mxu0 %v594
        %630 = vmatprep.subr.mxu0 0.0
        %631 = vmatpush2.msra.mxu0 0.0
        %632 = vmatprep.subr.mxu0 0.0
        %633 = vmatpush2.msra.mxu0 0.0
        %634 = vmatprep.subr.mxu0 0.0
        %635 = vmatpush2.msra.mxu0 0.0
        %636 = vmatprep.subr.mxu0 0.0
        %637 = vmatpush2.msra.mxu0 0.0
        %638 = vmatprep.subr.mxu0 0.0
        %639 = vmatpush2.msra.mxu0 0.0
        %640 = vmatprep.subr.mxu0 0.0
        %641 = vmatpush2.msra.mxu0 0.0
        %642 = vmatprep.subr.mxu0 0.0
        %643 = vmatpush2.msra.mxu0 0.0
        %644 = vmatprep.subr.mxu0 0.0
        %645 = vmatpush2.msra.mxu0 0.0
        %646 = vmatprep.subr.mxu0 0.0
        %647 = vmatpush2.msra.mxu0 0.0
        %648 = vmatprep.subr.mxu0 0.0
        %649 = vmatpush2.msra.mxu0 0.0
        %650 = vmatprep.subr.mxu0 0.0
        %651 = vmatpush2.msra.mxu0 0.0
        %652 = vmatprep.subr.mxu0 0.0
        %653 = vmatpush2.msra.mxu0 0.0
        %654 = vmatprep.subr.mxu0 0.0
        %655 = vmatpush2.msra.mxu0 0.0
        %656 = vmatprep.subr.mxu0 0.0
        %657 = vmatpush2.msra.mxu0 0.0
        %658 = vmatprep.subr.mxu0 0.0
        %659 = vmatpush2.msra.mxu0 0.0
        %660 = vmatprep.subr.mxu0 0.0
        %661 = vmatpush2.msra.mxu0 0.0
        %662 = vmatprep.mubr.f32.mxu0 0.0
        %663 = vmatmul.mubr.f32.gmra.mxu0 %v596
        %v664 = vpop.f32.mrf.mxu0
        %v665 = vadd.f32 0.0, %v664
        %v666 = vpop.f32.mrf.mxu0
        %667 = vdwg.mxu0
        %v668 = vld [vmem:[#allocation9] sm:$0xff]
        %v669 = vld [vmem:[#allocation9 + $0x8] sm:$0xff]
        %v670 = vld [vmem:[#allocation9 + $0x10] sm:$0xff]
        %v671 = vld [vmem:[#allocation9 + $0x18] sm:$0xff]
        %v672 = vld [vmem:[%s6] sm:$0x1]
        %v674 = vlaneseq
        %v675 = vshrl.u32 %v674, 7
        %v676 = vsub.s32 0, %v675
        %v677 = vrot.slane %v672, %v676
        %v680 = vsel %vm484, %v665, 0
        %682 = vmatprep.subr.mxu0 0.0
        %683 = vmatpush1.msra.mxu0 0.0
        %684 = vmatprep.subr.mxu0 0.0
        %685 = vmatpush1.msra.mxu0 0.0
        %686 = vmatprep.subr.mxu0 0.0
        %687 = vmatpush1.msra.mxu0 0.0
        %688 = vmatprep.subr.mxu0 0.0
        %689 = vmatpush1.msra.mxu0 0.0
        %690 = vmatprep.subr.mxu0 0.0
        %691 = vmatpush1.msra.mxu0 0.0
        %692 = vmatprep.subr.mxu0 0.0
        %693 = vmatpush1.msra.mxu0 0.0
        %694 = vmatprep.subr.mxu0 0.0
        %695 = vmatpush1.msra.mxu0 0.0
        %696 = vmatprep.subr.mxu0 0.0
        %697 = vmatpush1.msra.mxu0 0.0
        %698 = vmatprep.subr.mxu0 0.0
        %699 = vmatpush1.msra.mxu0 0.0
        %700 = vmatprep.subr.mxu0 0.0
        %701 = vmatpush1.msra.mxu0 0.0
        %702 = vmatprep.subr.mxu0 0.0
        %703 = vmatpush1.msra.mxu0 0.0
        %704 = vmatprep.subr.mxu0 0.0
        %705 = vmatpush1.msra.mxu0 0.0
        %706 = vmatprep.subr.mxu0 0.0
        %707 = vmatpush1.msra.mxu0 %v671
        %708 = vmatprep.subr.mxu0 0.0
        %709 = vmatpush1.msra.mxu0 %v670
        %710 = vmatprep.subr.mxu0 0.0
        %711 = vmatpush1.msra.mxu0 %v669
        %712 = vmatprep.subr.mxu0 0.0
        %713 = vmatpush1.msra.mxu0 %v668
        %714 = vmatprep.subr.mxu0 0.0
        %715 = vmatpush2.msra.mxu0 0.0
        %716 = vmatprep.subr.mxu0 0.0
        %717 = vmatpush2.msra.mxu0 0.0
        %718 = vmatprep.subr.mxu0 0.0
        %719 = vmatpush2.msra.mxu0 0.0
        %720 = vmatprep.subr.mxu0 0.0
        %721 = vmatpush2.msra.mxu0 0.0
        %722 = vmatprep.subr.mxu0 0.0
        %723 = vmatpush2.msra.mxu0 0.0
        %724 = vmatprep.subr.mxu0 0.0
        %725 = vmatpush2.msra.mxu0 0.0
        %726 = vmatprep.subr.mxu0 0.0
        %727 = vmatpush2.msra.mxu0 0.0
        %728 = vmatprep.subr.mxu0 0.0
        %729 = vmatpush2.msra.mxu0 0.0
        %730 = vmatprep.subr.mxu0 0.0
        %731 = vmatpush2.msra.mxu0 0.0
        %732 = vmatprep.subr.mxu0 0.0
        %733 = vmatpush2.msra.mxu0 0.0
        %734 = vmatprep.subr.mxu0 0.0
        %735 = vmatpush2.msra.mxu0 0.0
        %736 = vmatprep.subr.mxu0 0.0
        %737 = vmatpush2.msra.mxu0 0.0
        %738 = vmatprep.subr.mxu0 0.0
        %739 = vmatpush2.msra.mxu0 0.0
        %740 = vmatprep.subr.mxu0 0.0
        %741 = vmatpush2.msra.mxu0 0.0
        %742 = vmatprep.subr.mxu0 0.0
        %743 = vmatpush2.msra.mxu0 0.0
        %744 = vmatprep.subr.mxu0 0.0
        %745 = vmatpush2.msra.mxu0 0.0
        %746 = vmatprep.mubr.f32.mxu0 0.0
        %747 = vmatmul.mubr.f32.gmra.mxu0 %v680
        %v748 = vpop.f32.mrf.mxu0
        %v749 = vadd.f32 %v677, %v748
        %v750 = vpop.f32.mrf.mxu0
        %751 = vdwg.mxu0
        %v752 = vmax.f32 %v749, 0.0
        %753 = vst.msk [vmem:[%s387] sm:$0xff] %vm484, %v752
        %s754 = sand.u32 %s214, 1
        %s755 = scalar_lea.sflag [#allocation5], %s754
        %s756 = sand.u32 %s214, 1
        %s757 = smul.addr %s756, 8
        %s758 = scalar_lea.vmem [#allocation11], %s757
        // Predicated region
        $region69: #{tpu_custom_call.1} parent=47 // pred_check
          %p759 = pneg %p224
        $region70: #{tpu_custom_call.1} parent=47 // pred_check_branch
          %761 = sbr.rel (%p759) target = $region72
        $region71: #{tpu_custom_call.1} parent=47 // pred_region
          %s763 = ssub.s32 128, 128
          %764 = vsyncadd %s755, %s763
          %s765 = sadd.s32 %s33, %s32
          %s766 = smul.addr %s765, 128
          %s767 = scalar_lea.hbm %s7, %s766
          %s769 = sshll.u32 %s758, 4
          %s770 = int_to_ptr.vmem [resolvable:$true] %s769
          %772 = dma.vmem_to_hbm [thread:$0]  %s770, 128, %s767, %s755
        $region72: #{tpu_custom_call.1} parent=47 // pred_fallthru
          _
      $region48: #{tpu_custom_call.1} parent=5 // pred_fallthru
        _
      %p773 = scmp.le.s32.totalorder 2, %s23
      // Predicated region
      $region73: #{tpu_custom_call.1} parent=5 // pred_check
        %p774 = pneg %p773
      $region74: #{tpu_custom_call.1} parent=5 // pred_check_branch
        %776 = sbr.rel (%p774) target = $region76
      $region75: #{tpu_custom_call.1} parent=5 // pred_region
        %s777 = ssub.s32 %s23, 2
        // Predicated region
        $region77: #{tpu_custom_call.1} parent=75 // pred_check
          %p778 = pneg %p230
        $region78: #{tpu_custom_call.1} parent=75 // pred_check_branch
          %780 = sbr.rel (%p778) target = $region80
        $region79: #{tpu_custom_call.1} parent=75 // pred_region
          %s781 = sand.u32 %s215, 1
          %s782 = scalar_lea.sflag [#allocation5], %s781
          %s783 = sand.u32 %s215, 1
          %s784 = smul.addr %s783, 8
          %s785 = scalar_lea.vmem [#allocation11], %s784
          %786 = dma.done %s782, 128
        $region80: #{tpu_custom_call.1} parent=75 // pred_fallthru
          _
      $region76: #{tpu_custom_call.1} parent=5 // pred_fallthru
        _
    $region6: #{tpu_custom_call.1} parent=1 // loop_footer
      %s27 = sadd.s32 1, %s23
    $region7: #{tpu_custom_call.1} parent=1 // loop_footer_branch
      %22 = sbr.rel target = $region3
    $region8: #{tpu_custom_call.1} parent=1 // loop_exit
      _
    %787 = vsyncpa [#allocation4], 1
    %s788 = scalar_lea.sflag [#allocation4], 1
    %789 = vsyncpa %s788, 1
    %790 = vsyncpa [#allocation7], 1
    %s791 = scalar_lea.sflag [#allocation7], 1
    %792 = vsyncpa %s791, 1
    %793 = vsyncpa [#allocation10], 1
    %794 = vsyncpa [#allocation5], 1
    %s795 = scalar_lea.sflag [#allocation5], 1
    %796 = vsyncpa %s795, 1

</llo_original>
